<compile_context>
chip_gen: v5e
topology: v5e:2x2
jax: 0.10.0
libtpu: 0.0.40
codegen_flags: <defaults>
</compile_context>

<pallas_src>
import functools
import math

import jax
import jax.numpy as jnp
from jax import lax
from jax.experimental import pallas as pl
from jax.experimental.pallas import tpu as pltpu

_IOU_EPS = 1e-7          # eps used inside bbox_iou
_IN_GTS_EPS = 1e-9       # eps of select_candidates_in_gts
_NEG_PAD = -1e30         # align value assigned to padded anchors before top-k


def _powf(x, p):
    """x ** p, using repeated multiplication for small integer p so the Pallas kernel
    and the pure-JAX reference produce bit-identical results."""
    p = float(p)
    if p == 1.0:
        return x
    if p.is_integer() and p >= 2.0:
        y = x
        for _ in range(int(p) - 1):
            y = y * x
        return y
    return jnp.power(x, p)  # TODO(synk): non-integer alpha/beta rely on jnp.power lowering


# --------------------------------------------------------------------------------------
# Kernel 1: pairwise metrics  ->  mask_in_gts*mask_gt, CIoU overlaps, align metric
# --------------------------------------------------------------------------------------
def _metrics_kernel(anc_ref, pdf_ref, pst_ref, oh_ref, gb_ref, gatan_ref, mg_ref,
                    mask_ref, ov_ref, al_ref, *, alpha, beta):
    ax = anc_ref[0:1, :]                       # (1, TA)
    ay = anc_ref[1:2, :]

    pdf = pdf_ref[0]                           # (5, TA): x1, y1, x2, y2, atan(w/h)
    px1, py1 = pdf[0:1, :], pdf[1:2, :]
    px2, py2 = pdf[2:3, :], pdf[3:4, :]
    patan = pdf[4:5, :]

    gb = gb_ref[0]                             # (M, 4)
    gx1, gy1 = gb[:, 0:1], gb[:, 1:2]          # (M, 1)
    gx2, gy2 = gb[:, 2:3], gb[:, 3:4]
    gatan = gatan_ref[0]                       # (M, 1)
    mgt = mg_ref[0] > 0                        # (M, 1)  (mask_gt assumed binary 0/1)

    # ---- select_candidates_in_gts ----
    d_l = ax - gx1
    d_t = ay - gy1
    d_r = gx2 - ax
    d_b = gy2 - ay
    mind = jnp.minimum(jnp.minimum(d_l, d_t), jnp.minimum(d_r, d_b))
    mask = jnp.logical_and(mind > _IN_GTS_EPS, mgt)              # (M, TA)

    # ---- class-score gather on the MXU: one_hot(M, NC) @ scores_t(NC, TA) ----
    onehot = oh_ref[0]                          # (M, NC) f32, one-hot of gt_labels
    scores_t = pst_ref[0]                       # (NC, TA) f32
    bbox_scores = jnp.dot(onehot, scores_t,
                          preferred_element_type=jnp.float32,
                          precision=lax.Precision.HIGHEST)       # (M, TA)
    bbox_scores = jnp.where(mask, bbox_scores, 0.0)

    # ---- CIoU(gt = box1, pd = box2), xywh=False ----
    e = _IOU_EPS
    w1 = gx2 - gx1
    h1 = gy2 - gy1 + e
    w2 = px2 - px1
    h2 = py2 - py1 + e
    inter = (jnp.maximum(jnp.minimum(gx2, px2) - jnp.maximum(gx1, px1), 0.0) *
             jnp.maximum(jnp.minimum(gy2, py2) - jnp.maximum(gy1, py1), 0.0))
    union = w1 * h1 + w2 * h2 - inter + e
    iou = inter / union
    cw = jnp.maximum(gx2, px2) - jnp.minimum(gx1, px1)
    ch = jnp.maximum(gy2, py2) - jnp.minimum(gy1, py1)
    c2 = cw * cw + ch * ch + e
    rho2 = ((px1 + px2 - gx1 - gx2) ** 2 + (py1 + py2 - gy1 - gy2) ** 2) / 4.0
    v = (4.0 / math.pi ** 2) * (patan - gatan) ** 2      # per-box atan precomputed in JAX
    a = v / (v - iou + (1.0 + e))
    ciou = iou - (rho2 / c2 + v * a)
    overlaps = jnp.where(mask, jnp.maximum(ciou, 0.0), 0.0)

    align = _powf(bbox_scores, alpha) * _powf(overlaps, beta)

    mask_ref[0] = mask.astype(jnp.float32)
    ov_ref[0] = overlaps
    al_ref[0] = align


# --------------------------------------------------------------------------------------
# Kernel 2: top-k count + select_highest_overlaps.  Also accumulates pos_align / pos_ov
#           (row maxima over all anchors) across the anchor grid axis.
# --------------------------------------------------------------------------------------
def _resolve_kernel(tk_ref, mask_ref, ov_ref, al_ref,
                    fg_out, idx_out, mal_out, pam_out, pov_out):
    a_tile = pl.program_id(1)

    idxs = tk_ref[0]                               # (M, TOPK) int32, pre-masked by mask_gt
    mask = mask_ref[0]                             # (M, TA) f32
    ov = ov_ref[0]
    al = al_ref[0]
    m, ta = mask.shape
    topk = idxs.shape[-1]

    # ---- scatter-count of the top-k indices against this tile's global anchor ids ----
    a_iota = lax.broadcasted_iota(jnp.int32, (m, ta), 1) + a_tile * ta
    count = jnp.zeros((m, ta), jnp.int32)
    for k in range(topk):                          # unrolled, topk is small (13)
        count = count + (idxs[:, k:k + 1] == a_iota).astype(jnp.int32)
    count = jnp.where(count > 1, 0, count)
    mp = count.astype(jnp.float32) * mask          # mask_pos before multi-gt resolution

    # ---- select_highest_overlaps ----
    iota_m = lax.broadcasted_iota(jnp.int32, (m, ta), 0)
    fg = jnp.sum(mp, axis=0, keepdims=True)        # (1, TA)
    multi = fg > 1.0

    max_ov = jnp.max(ov, axis=0, keepdims=True)
    ov_argmax = jnp.min(jnp.where(ov == max_ov, iota_m, m), axis=0, keepdims=True)
    is_max = (iota_m == ov_argmax).astype(jnp.float32)

    mp = jnp.where(multi, is_max, mp)
    fg_out[0] = jnp.sum(mp, axis=0, keepdims=True)

    max_mp = jnp.max(mp, axis=0, keepdims=True)
    idx_out[0] = jnp.min(jnp.where(mp == max_mp, iota_m, m), axis=0, keepdims=True)

    mal = al * mp
    mov = ov * mp
    mal_out[0] = mal

    # ---- running max over anchor tiles -> pos_align / pos_ov (resident accumulators) ----
    tile_pam = jnp.max(mal, axis=1, keepdims=True)   # (M, 1)
    tile_pov = jnp.max(mov, axis=1, keepdims=True)

    @pl.when(a_tile == 0)
    def _():
        pam_out[0] = tile_pam
        pov_out[0] = tile_pov

    @pl.when(a_tile > 0)
    def _():
        pam_out[0] = jnp.maximum(pam_out[0], tile_pam)
        pov_out[0] = jnp.maximum(pov_out[0], tile_pov)


# --------------------------------------------------------------------------------------
# Kernel 3: get_targets + score normalisation (per-anchor gathers / one-hots)
# --------------------------------------------------------------------------------------
def _targets_kernel(idx_ref, fg_ref, mal_ref, gl_ref, gbt_ref, pam_ref, pov_ref,
                    tl_out, tb_out, ts_out, *, eps):
    idx = idx_ref[0]                               # (1, TA) int32
    fg = fg_ref[0]                                 # (1, TA) f32
    mal = mal_ref[0]                               # (M, TA)
    labels = jnp.maximum(gl_ref[0], 0)             # (M, 1) int32, clamp(0)
    gbt = gbt_ref[0]                               # (4, M) gt bboxes (transposed)
    pam = pam_ref[0]                               # (M, 1)
    pov = pov_ref[0]                               # (M, 1)

    m = labels.shape[0]
    ta = idx.shape[-1]
    nc = ts_out.shape[1]

    iota_m = lax.broadcasted_iota(jnp.int32, (m, ta), 0)
    sel = iota_m == idx                            # (M, TA), exactly one True per anchor
    selF = sel.astype(jnp.float32)

    # target labels: masked integer gather over M
    tl = jnp.sum(jnp.where(sel, labels, 0), axis=0, keepdims=True)       # (1, TA) int32
    tl_out[0] = tl

    # target bboxes: (4, M) @ (M, TA) one-hot gather on the MXU
    tb_out[0] = jnp.dot(gbt, selF, preferred_element_type=jnp.float32,
                        precision=lax.Precision.HIGHEST)                 # (4, TA)

    # target scores: one-hot of the gathered label, gated by fg_mask, scaled by norm
    cls_iota = lax.broadcasted_iota(jnp.int32, (nc, ta), 0)
    scores_onehot = (cls_iota == tl).astype(jnp.float32)                 # (NC, TA)

    ratio = mal * pov / (pam + eps)
    norm = jnp.max(ratio, axis=0, keepdims=True)                         # (1, TA)
    ts_out[0] = jnp.where(fg > 0, scores_onehot, 0.0) * norm


# --------------------------------------------------------------------------------------
# Wrapper
# --------------------------------------------------------------------------------------
def task_aligned_assigner(pd_scores, pd_bboxes, anc_points, gt_labels, gt_bboxes, mask_gt,
                          *, topk=13, num_classes=80, alpha=1.0, beta=6.0, eps=1e-9,
                          tile_anchors=512):
    f32 = jnp.float32
    bs, na, nc = pd_scores.shape
    M = gt_bboxes.shape[1]
    assert nc == num_classes
    if M == 0:
        return (jnp.full((bs, na), num_classes, jnp.int32),
                jnp.zeros_like(pd_bboxes),
                jnp.zeros_like(pd_scores),
                jnp.zeros((bs, na), jnp.bool_),
                jnp.zeros((bs, na), jnp.int32))

    assert tile_anchors % 128 == 0
    ta = min(tile_anchors, pl.cdiv(na, 128) * 128)
    na_pad = pl.cdiv(na, ta) * ta
    pad = na_pad - na
    grid = (bs, na_pad // ta)
    cparams_par = pltpu.CompilerParams(dimension_semantics=("parallel", "parallel"))
    cparams_acc = pltpu.CompilerParams(dimension_semantics=("parallel", "arbitrary"))

    pd_scores = pd_scores.astype(f32)
    pd_bboxes = pd_bboxes.astype(f32)
    anc_points = anc_points.astype(f32)
    gt_bboxes = gt_bboxes.astype(f32)
    gt_labels_i = gt_labels.astype(jnp.int32).reshape(bs, M, 1)
    mask_gt = mask_gt.astype(f32).reshape(bs, M, 1)

    if pad:
        # padded anchors get far-away centers -> mask_in_gts is False, metrics masked to 0
        pd_scores = jnp.pad(pd_scores, ((0, 0), (0, pad), (0, 0)))
        pd_bboxes = jnp.pad(pd_bboxes, ((0, 0), (0, pad), (0, 0)))
        anc_points = jnp.pad(anc_points, ((0, pad), (0, 0)), constant_values=-1e9)

    # Per-box features precomputed in JAX (per-box quantities; the O(M*NA) pairwise math
    # stays inside the kernels).
    pw = pd_bboxes[..., 2] - pd_bboxes[..., 0]
    ph = pd_bboxes[..., 3] - pd_bboxes[..., 1] + _IOU_EPS
    pd_atan = jnp.arctan(pw / ph)                                        # (bs, na_pad)
    pd_feat = jnp.concatenate(
        [jnp.transpose(pd_bboxes, (0, 2, 1)), pd_atan[:, None, :]], axis=1)   # (bs, 5, na_pad)
    pd_scores_t = jnp.transpose(pd_scores, (0, 2, 1))                    # (bs, nc, na_pad)
    gw = gt_bboxes[..., 2] - gt_bboxes[..., 0]
    gh = gt_bboxes[..., 3] - gt_bboxes[..., 1] + _IOU_EPS
    gt_atan = jnp.arctan(gw / gh)[..., None]                             # (bs, M, 1)
    anc_t = jnp.transpose(anc_points, (1, 0))                            # (2, na_pad)
    gt_onehot = (gt_labels_i == jnp.arange(nc, dtype=jnp.int32)[None, None, :]
                 ).astype(f32)                                           # (bs, M, nc)
    gt_bboxes_t = jnp.transpose(gt_bboxes, (0, 2, 1))                    # (bs, 4, M)

    # ---------------- Kernel 1: pairwise metrics ----------------
    mask, overlaps, align_metric = pl.pallas_call(
        functools.partial(_metrics_kernel, alpha=alpha, beta=beta),
        grid=grid,
        in_specs=[
            pl.BlockSpec((2, ta), lambda b, a: (0, a)),
            pl.BlockSpec((1, 5, ta), lambda b, a: (b, 0, a)),
            pl.BlockSpec((1, nc, ta), lambda b, a: (b, 0, a)),
            pl.BlockSpec((1, M, nc), lambda b, a: (b, 0, 0)),
            pl.BlockSpec((1, M, 4), lambda b, a: (b, 0, 0)),
            pl.BlockSpec((1, M, 1), lambda b, a: (b, 0, 0)),
            pl.BlockSpec((1, M, 1), lambda b, a: (b, 0, 0)),
        ],
        out_specs=[pl.BlockSpec((1, M, ta), lambda b, a: (b, 0, a))] * 3,
        out_shape=[jax.ShapeDtypeStruct((bs, M, na_pad), f32)] * 3,
        compiler_params=cparams_par,
    )(anc_t, pd_feat, pd_scores_t, gt_onehot, gt_bboxes, gt_atan, mask_gt)

    # ---------------- top-k candidate selection (XLA glue; global sort only) ----------------
    # TODO(synk): the global per-gt top-k over all anchors is kept as lax.top_k; the heavy
    #             scatter/count step now runs inside kernel 2.
    if pad:
        anchor_valid = (jnp.arange(na_pad) < na)[None, None, :]
        align_for_topk = jnp.where(anchor_valid, align_metric, _NEG_PAD)
    else:
        align_for_topk = align_metric
    _, topk_idxs = lax.top_k(align_for_topk, topk)                       # (bs, M, topk)
    topk_idxs = jnp.where(mask_gt > 0, topk_idxs, 0).astype(jnp.int32)

    # ---------------- Kernel 2: count + resolve + running maxima ----------------
    mp_spec = pl.BlockSpec((1, M, ta), lambda b, a: (b, 0, a))
    row_spec = pl.BlockSpec((1, 1, ta), lambda b, a: (b, 0, a))
    acc_spec = pl.BlockSpec((1, M, 1), lambda b, a: (b, 0, 0))
    fg, tgt_idx, masked_align, pos_align, pos_ov = pl.pallas_call(
        _resolve_kernel,
        grid=grid,
        in_specs=[pl.BlockSpec((1, M, topk), lambda b, a: (b, 0, 0)),
                  mp_spec, mp_spec, mp_spec],
        out_specs=[row_spec, row_spec, mp_spec, acc_spec, acc_spec],
        out_shape=[
            jax.ShapeDtypeStruct((bs, 1, na_pad), f32),
            jax.ShapeDtypeStruct((bs, 1, na_pad), jnp.int32),
            jax.ShapeDtypeStruct((bs, M, na_pad), f32),
            jax.ShapeDtypeStruct((bs, M, 1), f32),
            jax.ShapeDtypeStruct((bs, M, 1), f32),
        ],
        compiler_params=cparams_acc,
    )(topk_idxs, mask, overlaps, align_metric)

    # ---------------- Kernel 3: targets ----------------
    tl, tb, ts = pl.pallas_call(
        functools.partial(_targets_kernel, eps=eps),
        grid=grid,
        in_specs=[
            row_spec, row_spec, mp_spec,
            pl.BlockSpec((1, M, 1), lambda b, a: (b, 0, 0)),
            pl.BlockSpec((1, 4, M), lambda b, a: (b, 0, 0)),
            acc_spec, acc_spec,
        ],
        out_specs=[
            pl.BlockSpec((1, 1, ta), lambda b, a: (b, 0, a)),
            pl.BlockSpec((1, 4, ta), lambda b, a: (b, 0, a)),
            pl.BlockSpec((1, nc, ta), lambda b, a: (b, 0, a)),
        ],
        out_shape=[
            jax.ShapeDtypeStruct((bs, 1, na_pad), jnp.int32),
            jax.ShapeDtypeStruct((bs, 4, na_pad), f32),
            jax.ShapeDtypeStruct((bs, nc, na_pad), f32),
        ],
        compiler_params=cparams_par,
    )(tgt_idx, fg, masked_align, gt_labels_i, gt_bboxes_t, pos_align, pos_ov)

    target_labels = tl[:, 0, :na]
    target_bboxes = jnp.transpose(tb[:, :, :na], (0, 2, 1))
    target_scores = jnp.transpose(ts[:, :, :na], (0, 2, 1))
    fg_mask = fg[:, 0, :na] > 0
    target_gt_idx = tgt_idx[:, 0, :na]
    return target_labels, target_bboxes, target_scores, fg_mask, target_gt_idx


# --------------------------------------------------------------------------------------
# Pure-JAX reference (mirrors the PyTorch forward) for verification
# --------------------------------------------------------------------------------------
def _reference(pd_scores, pd_bboxes, anc_points, gt_labels, gt_bboxes, mask_gt,
               topk, num_classes, alpha, beta, eps):
    f32 = jnp.float32
    bs, na, nc = pd_scores.shape
    M = gt_bboxes.shape[1]
    gt_labels_i = gt_labels.astype(jnp.int32).reshape(bs, M, 1)
    mask_gt = mask_gt.astype(f32).reshape(bs, M, 1)

    xy = anc_points[None, None, :, :]
    lt = gt_bboxes[:, :, None, :2]
    rb = gt_bboxes[:, :, None, 2:]
    deltas = jnp.concatenate([xy - lt, rb - xy], axis=-1)
    mask_in_gts = jnp.min(deltas, axis=-1) > _IN_GTS_EPS
    mask = jnp.logical_and(mask_in_gts, mask_gt > 0)

    b_idx = jnp.arange(bs)[:, None]
    bbox_scores = pd_scores[b_idx, :, gt_labels_i[:, :, 0]]              # (bs, M, na)
    bbox_scores = jnp.where(mask, bbox_scores, 0.0)

    gb = gt_bboxes[:, :, None, :]
    pb = pd_bboxes[:, None, :, :]
    e = _IOU_EPS
    gx1, gy1, gx2, gy2 = gb[..., 0], gb[..., 1], gb[..., 2], gb[..., 3]
    px1, py1, px2, py2 = pb[..., 0], pb[..., 1], pb[..., 2], pb[..., 3]
    w1, h1 = gx2 - gx1, gy2 - gy1 + e
    w2, h2 = px2 - px1, py2 - py1 + e
    inter = (jnp.maximum(jnp.minimum(gx2, px2) - jnp.maximum(gx1, px1), 0.0) *
             jnp.maximum(jnp.minimum(gy2, py2) - jnp.maximum(gy1, py1), 0.0))
    union = w1 * h1 + w2 * h2 - inter + e
    iou = inter / union
    cw = jnp.maximum(gx2, px2) - jnp.minimum(gx1, px1)
    ch = jnp.maximum(gy2, py2) - jnp.minimum(gy1, py1)
    c2 = cw * cw + ch * ch + e
    rho2 = ((px1 + px2 - gx1 - gx2) ** 2 + (py1 + py2 - gy1 - gy2) ** 2) / 4.0
    v = (4.0 / math.pi ** 2) * (jnp.arctan(w2 / h2) - jnp.arctan(w1 / h1)) ** 2
    a = v / (v - iou + (1.0 + e))
    ciou = iou - (rho2 / c2 + v * a)
    overlaps = jnp.where(mask, jnp.maximum(ciou, 0.0), 0.0)
    align = _powf(bbox_scores, alpha) * _powf(overlaps, beta)

    _, topk_idxs = lax.top_k(align, topk)
    topk_idxs = jnp.where(mask_gt > 0, topk_idxs, 0)
    count = jnp.sum(jax.nn.one_hot(topk_idxs, na, dtype=jnp.int32), axis=-2)
    count = jnp.where(count > 1, 0, count).astype(f32)
    mask_pos = count * mask_in_gts.astype(f32) * mask_gt

    fg = mask_pos.sum(-2)
    multi = fg[:, None, :] > 1
    max_idx = jnp.argmax(overlaps, axis=1)
    is_max = jax.nn.one_hot(max_idx, M, axis=1, dtype=f32)
    mask_pos = jnp.where(multi, is_max, mask_pos)
    fg = mask_pos.sum(-2)
    target_gt_idx = jnp.argmax(mask_pos, axis=-2)

    tl = jnp.take_along_axis(gt_labels_i[:, :, 0], target_gt_idx, axis=1)
    tb = jnp.take_along_axis(gt_bboxes, target_gt_idx[..., None], axis=1)
    tl = jnp.maximum(tl, 0)
    ts = jax.nn.one_hot(tl, num_classes, dtype=f32)
    ts = jnp.where(fg[..., None] > 0, ts, 0.0)

    align = align * mask_pos
    pos_align = jnp.max(align, axis=-1, keepdims=True)
    pos_ov = jnp.max(overlaps * mask_pos, axis=-1, keepdims=True)
    norm = jnp.max(align * pos_ov / (pos_align + eps), axis=-2)[..., None]
    ts = ts * norm
    return tl, tb, ts, fg > 0, target_gt_idx


if __name__ == "__main__":
    key = jax.random.PRNGKey(0)
    bs, na, nc, M, topk = 2, 640, 16, 8, 13        # na=640 -> padded to 1024, 2 anchor tiles
    ks = jax.random.split(key, 8)

    anc_points = jax.random.uniform(ks[0], (na, 2), jnp.float32, 0.0, 32.0)
    wh_p = jax.random.uniform(ks[1], (bs, na, 2), jnp.float32, 1.0, 8.0)
    off = jax.random.uniform(ks[2], (bs, na, 2), jnp.float32, -1.0, 1.0)
    ctr = anc_points[None] + off
    pd_bboxes = jnp.concatenate([ctr - wh_p / 2, ctr + wh_p / 2], axis=-1)
    pd_scores = jax.random.uniform(ks[3], (bs, na, nc), jnp.float32, 0.0, 1.0)

    gt_ctr = jax.random.uniform(ks[4], (bs, M, 2), jnp.float32, 6.0, 26.0)
    gt_wh = jax.random.uniform(ks[5], (bs, M, 2), jnp.float32, 4.0, 14.0)
    gt_bboxes = jnp.concatenate([gt_ctr - gt_wh / 2, gt_ctr + gt_wh / 2], axis=-1)
    gt_labels = jax.random.randint(ks[6], (bs, M, 1), 0, nc)
    mask_gt = (jnp.arange(M)[None, :, None] <
               jnp.array([5, 3])[:, None, None]).astype(jnp.float32)
    gt_bboxes = gt_bboxes * mask_gt
    gt_labels = jnp.where(mask_gt > 0, gt_labels, 0)

    outs = task_aligned_assigner(pd_scores, pd_bboxes, anc_points, gt_labels, gt_bboxes,
                                 mask_gt, topk=topk, num_classes=nc, tile_anchors=512)
    outs = jax.block_until_ready(outs)
    tl, tb, ts, fg, tgi = outs

    rtl, rtb, rts, rfg, rtgi = _reference(pd_scores, pd_bboxes, anc_points, gt_labels,
                                          gt_bboxes, mask_gt, topk, nc, 1.0, 6.0, 1e-9)

    assert jnp.array_equal(tgi, rtgi.astype(jnp.int32)), "target_gt_idx mismatch"
    assert jnp.array_equal(fg, rfg), "fg_mask mismatch"
    assert jnp.array_equal(tl, rtl.astype(jnp.int32)), "target_labels mismatch"
    assert jnp.allclose(tb, rtb, atol=1e-5, rtol=1e-5), "target_bboxes mismatch"
    assert jnp.allclose(ts, rts, atol=1e-5, rtol=1e-5), "target_scores mismatch"

    print("KERNEL_OK")
</pallas_src>

<mosaic_0001>
module attributes {stable_mosaic.version = 11 : i64} {
  func.func @_metrics_kernel(%arg0: i32, %arg1: i32, %arg2: memref<2x512xf32, #tpu.memory_space<vmem>>, %arg3: memref<1x5x512xf32, #tpu.memory_space<vmem>>, %arg4: memref<1x16x512xf32, #tpu.memory_space<vmem>>, %arg5: memref<1x8x16xf32, #tpu.memory_space<vmem>>, %arg6: memref<1x8x4xf32, #tpu.memory_space<vmem>>, %arg7: memref<1x8x1xf32, #tpu.memory_space<vmem>>, %arg8: memref<1x8x1xf32, #tpu.memory_space<vmem>>, %arg9: memref<1x8x512xf32, #tpu.memory_space<vmem>>, %arg10: memref<1x8x512xf32, #tpu.memory_space<vmem>>, %arg11: memref<1x8x512xf32, #tpu.memory_space<vmem>>) attributes {dimension_semantics = [#tpu.dimension_semantics<parallel>, #tpu.dimension_semantics<parallel>], iteration_bounds = array<i64: 2, 2>, scalar_prefetch = 0 : i64, scratch_operands = 0 : i64, tpu.core_type = #tpu.core_type<tc>, window_params = [{transform_indices = @transform_0, window_bounds = array<i64: 2, 512>}, {transform_indices = @transform_1, window_bounds = array<i64: 1, 5, 512>}, {transform_indices = @transform_2, window_bounds = array<i64: 1, 16, 512>}, {transform_indices = @transform_3, window_bounds = array<i64: 1, 8, 16>}, {transform_indices = @transform_4, window_bounds = array<i64: 1, 8, 4>}, {transform_indices = @transform_5, window_bounds = array<i64: 1, 8, 1>}, {transform_indices = @transform_6, window_bounds = array<i64: 1, 8, 1>}, {transform_indices = @transform_7, window_bounds = array<i64: 1, 8, 512>}, {transform_indices = @transform_8, window_bounds = array<i64: 1, 8, 512>}, {transform_indices = @transform_9, window_bounds = array<i64: 1, 8, 512>}]} {
    %c0 = arith.constant 0 : index
    %c0_0 = arith.constant 0 : index
    %0 = vector.load %arg2[%c0, %c0_0] : memref<2x512xf32, #tpu.memory_space<vmem>>, vector<1x512xf32>
    %c1 = arith.constant 1 : index
    %c0_1 = arith.constant 0 : index
    %1 = vector.load %arg2[%c1, %c0_1] : memref<2x512xf32, #tpu.memory_space<vmem>>, vector<1x512xf32>
    %c0_2 = arith.constant 0 : index
    %c0_3 = arith.constant 0 : index
    %c0_4 = arith.constant 0 : index
    %2 = vector.load %arg3[%c0_2, %c0_3, %c0_4] : memref<1x5x512xf32, #tpu.memory_space<vmem>>, vector<1x5x512xf32>
    %3 = vector.shape_cast %2 : vector<1x5x512xf32> to vector<5x512xf32>
    %4 = vector.extract_strided_slice %3 {offsets = [0, 0], sizes = [1, 512], strides = [1, 1]} : vector<5x512xf32> to vector<1x512xf32>
    %5 = vector.extract_strided_slice %3 {offsets = [1, 0], sizes = [1, 512], strides = [1, 1]} : vector<5x512xf32> to vector<1x512xf32>
    %6 = vector.extract_strided_slice %3 {offsets = [2, 0], sizes = [1, 512], strides = [1, 1]} : vector<5x512xf32> to vector<1x512xf32>
    %7 = vector.extract_strided_slice %3 {offsets = [3, 0], sizes = [1, 512], strides = [1, 1]} : vector<5x512xf32> to vector<1x512xf32>
    %8 = vector.extract_strided_slice %3 {offsets = [4, 0], sizes = [1, 512], strides = [1, 1]} : vector<5x512xf32> to vector<1x512xf32>
    %c0_5 = arith.constant 0 : index
    %c0_6 = arith.constant 0 : index
    %c0_7 = arith.constant 0 : index
    %9 = vector.load %arg6[%c0_5, %c0_6, %c0_7] : memref<1x8x4xf32, #tpu.memory_space<vmem>>, vector<1x8x4xf32>
    %10 = vector.shape_cast %9 : vector<1x8x4xf32> to vector<8x4xf32>
    %11 = vector.extract_strided_slice %10 {offsets = [0, 0], sizes = [8, 1], strides = [1, 1]} : vector<8x4xf32> to vector<8x1xf32>
    %12 = vector.extract_strided_slice %10 {offsets = [0, 1], sizes = [8, 1], strides = [1, 1]} : vector<8x4xf32> to vector<8x1xf32>
    %13 = vector.extract_strided_slice %10 {offsets = [0, 2], sizes = [8, 1], strides = [1, 1]} : vector<8x4xf32> to vector<8x1xf32>
    %14 = vector.extract_strided_slice %10 {offsets = [0, 3], sizes = [8, 1], strides = [1, 1]} : vector<8x4xf32> to vector<8x1xf32>
    %c0_8 = arith.constant 0 : index
    %c0_9 = arith.constant 0 : index
    %c0_10 = arith.constant 0 : index
    %15 = vector.load %arg7[%c0_8, %c0_9, %c0_10] : memref<1x8x1xf32, #tpu.memory_space<vmem>>, vector<1x8x1xf32>
    %16 = vector.shape_cast %15 : vector<1x8x1xf32> to vector<8x1xf32>
    %c0_11 = arith.constant 0 : index
    %c0_12 = arith.constant 0 : index
    %c0_13 = arith.constant 0 : index
    %17 = vector.load %arg8[%c0_11, %c0_12, %c0_13] : memref<1x8x1xf32, #tpu.memory_space<vmem>>, vector<1x8x1xf32>
    %18 = vector.shape_cast %17 : vector<1x8x1xf32> to vector<8x1xf32>
    %cst = arith.constant 0.000000e+00 : f32
    %19 = vector.broadcast %cst : f32 to vector<8x1xf32>
    %20 = arith.cmpf ogt, %18, %19 : vector<8x1xf32>
    %21 = vector.broadcast %0 : vector<1x512xf32> to vector<8x512xf32>
    %22 = vector.broadcast %11 : vector<8x1xf32> to vector<8x512xf32>
    %23 = arith.subf %21, %22 : vector<8x512xf32>
    %24 = vector.broadcast %1 : vector<1x512xf32> to vector<8x512xf32>
    %25 = vector.broadcast %12 : vector<8x1xf32> to vector<8x512xf32>
    %26 = arith.subf %24, %25 : vector<8x512xf32>
    %27 = vector.broadcast %13 : vector<8x1xf32> to vector<8x512xf32>
    %28 = vector.broadcast %0 : vector<1x512xf32> to vector<8x512xf32>
    %29 = arith.subf %27, %28 : vector<8x512xf32>
    %30 = vector.broadcast %14 : vector<8x1xf32> to vector<8x512xf32>
    %31 = vector.broadcast %1 : vector<1x512xf32> to vector<8x512xf32>
    %32 = arith.subf %30, %31 : vector<8x512xf32>
    %33 = arith.minimumf %23, %26 : vector<8x512xf32>
    %34 = arith.minimumf %29, %32 : vector<8x512xf32>
    %35 = arith.minimumf %33, %34 : vector<8x512xf32>
    %cst_14 = arith.constant 9.99999971E-10 : f32
    %36 = vector.broadcast %cst_14 : f32 to vector<8x512xf32>
    %37 = arith.cmpf ogt, %35, %36 : vector<8x512xf32>
    %38 = vector.broadcast %20 : vector<8x1xi1> to vector<8x512xi1>
    %39 = arith.andi %37, %38 : vector<8x512xi1>
    %c0_15 = arith.constant 0 : index
    %c0_16 = arith.constant 0 : index
    %c0_17 = arith.constant 0 : index
    %40 = vector.load %arg5[%c0_15, %c0_16, %c0_17] : memref<1x8x16xf32, #tpu.memory_space<vmem>>, vector<1x8x16xf32>
    %41 = vector.shape_cast %40 : vector<1x8x16xf32> to vector<8x16xf32>
    %c0_18 = arith.constant 0 : index
    %c0_19 = arith.constant 0 : index
    %c0_20 = arith.constant 0 : index
    %42 = vector.load %arg4[%c0_18, %c0_19, %c0_20] : memref<1x16x512xf32, #tpu.memory_space<vmem>>, vector<1x16x512xf32>
    %43 = vector.shape_cast %42 : vector<1x16x512xf32> to vector<16x512xf32>
    %cst_21 = arith.constant dense<0.000000e+00> : vector<8x512xf32>
    %44 = tpu.matmul %41, %43, %cst_21 {dimension_numbers = #tpu.dot_dimension_numbers<[1], [0], [0], [1], [0, 0, 1, 1], [], []>, precision = #tpu.contract_precision<fp32>} : vector<8x16xf32>, vector<16x512xf32>, vector<8x512xf32> -> vector<8x512xf32>
    %cst_22 = arith.constant 0.000000e+00 : f32
    %45 = vector.broadcast %cst_22 : f32 to vector<8x512xf32>
    %46 = arith.select %39, %44, %45 : vector<8x512xi1>, vector<8x512xf32>
    %47 = arith.subf %13, %11 : vector<8x1xf32>
    %48 = arith.subf %14, %12 : vector<8x1xf32>
    %cst_23 = arith.constant 1.000000e-07 : f32
    %49 = vector.broadcast %cst_23 : f32 to vector<8x1xf32>
    %50 = arith.addf %48, %49 : vector<8x1xf32>
    %51 = arith.subf %6, %4 : vector<1x512xf32>
    %52 = arith.subf %7, %5 : vector<1x512xf32>
    %cst_24 = arith.constant 1.000000e-07 : f32
    %53 = vector.broadcast %cst_24 : f32 to vector<1x512xf32>
    %54 = arith.addf %52, %53 : vector<1x512xf32>
    %55 = vector.broadcast %13 : vector<8x1xf32> to vector<8x512xf32>
    %56 = vector.broadcast %6 : vector<1x512xf32> to vector<8x512xf32>
    %57 = arith.minimumf %55, %56 : vector<8x512xf32>
    %58 = vector.broadcast %11 : vector<8x1xf32> to vector<8x512xf32>
    %59 = vector.broadcast %4 : vector<1x512xf32> to vector<8x512xf32>
    %60 = arith.maximumf %58, %59 : vector<8x512xf32>
    %61 = arith.subf %57, %60 : vector<8x512xf32>
    %cst_25 = arith.constant 0.000000e+00 : f32
    %62 = vector.broadcast %cst_25 : f32 to vector<8x512xf32>
    %63 = arith.maximumf %61, %62 : vector<8x512xf32>
    %64 = vector.broadcast %14 : vector<8x1xf32> to vector<8x512xf32>
    %65 = vector.broadcast %7 : vector<1x512xf32> to vector<8x512xf32>
    %66 = arith.minimumf %64, %65 : vector<8x512xf32>
    %67 = vector.broadcast %12 : vector<8x1xf32> to vector<8x512xf32>
    %68 = vector.broadcast %5 : vector<1x512xf32> to vector<8x512xf32>
    %69 = arith.maximumf %67, %68 : vector<8x512xf32>
    %70 = arith.subf %66, %69 : vector<8x512xf32>
    %cst_26 = arith.constant 0.000000e+00 : f32
    %71 = vector.broadcast %cst_26 : f32 to vector<8x512xf32>
    %72 = arith.maximumf %70, %71 : vector<8x512xf32>
    %73 = arith.mulf %63, %72 : vector<8x512xf32>
    %74 = arith.mulf %47, %50 : vector<8x1xf32>
    %75 = arith.mulf %51, %54 : vector<1x512xf32>
    %76 = vector.broadcast %74 : vector<8x1xf32> to vector<8x512xf32>
    %77 = vector.broadcast %75 : vector<1x512xf32> to vector<8x512xf32>
    %78 = arith.addf %76, %77 : vector<8x512xf32>
    %79 = arith.subf %78, %73 : vector<8x512xf32>
    %cst_27 = arith.constant 1.000000e-07 : f32
    %80 = vector.broadcast %cst_27 : f32 to vector<8x512xf32>
    %81 = arith.addf %79, %80 : vector<8x512xf32>
    %82 = arith.divf %73, %81 : vector<8x512xf32>
    %83 = vector.broadcast %13 : vector<8x1xf32> to vector<8x512xf32>
    %84 = vector.broadcast %6 : vector<1x512xf32> to vector<8x512xf32>
    %85 = arith.maximumf %83, %84 : vector<8x512xf32>
    %86 = vector.broadcast %11 : vector<8x1xf32> to vector<8x512xf32>
    %87 = vector.broadcast %4 : vector<1x512xf32> to vector<8x512xf32>
    %88 = arith.minimumf %86, %87 : vector<8x512xf32>
    %89 = arith.subf %85, %88 : vector<8x512xf32>
    %90 = vector.broadcast %14 : vector<8x1xf32> to vector<8x512xf32>
    %91 = vector.broadcast %7 : vector<1x512xf32> to vector<8x512xf32>
    %92 = arith.maximumf %90, %91 : vector<8x512xf32>
    %93 = vector.broadcast %12 : vector<8x1xf32> to vector<8x512xf32>
    %94 = vector.broadcast %5 : vector<1x512xf32> to vector<8x512xf32>
    %95 = arith.minimumf %93, %94 : vector<8x512xf32>
    %96 = arith.subf %92, %95 : vector<8x512xf32>
    %97 = arith.mulf %89, %89 : vector<8x512xf32>
    %98 = arith.mulf %96, %96 : vector<8x512xf32>
    %99 = arith.addf %97, %98 : vector<8x512xf32>
    %cst_28 = arith.constant 1.000000e-07 : f32
    %100 = vector.broadcast %cst_28 : f32 to vector<8x512xf32>
    %101 = arith.addf %99, %100 : vector<8x512xf32>
    %102 = arith.addf %4, %6 : vector<1x512xf32>
    %103 = vector.broadcast %102 : vector<1x512xf32> to vector<8x512xf32>
    %104 = vector.broadcast %11 : vector<8x1xf32> to vector<8x512xf32>
    %105 = arith.subf %103, %104 : vector<8x512xf32>
    %106 = vector.broadcast %13 : vector<8x1xf32> to vector<8x512xf32>
    %107 = arith.subf %105, %106 : vector<8x512xf32>
    %108 = arith.mulf %107, %107 : vector<8x512xf32>
    %109 = arith.addf %5, %7 : vector<1x512xf32>
    %110 = vector.broadcast %109 : vector<1x512xf32> to vector<8x512xf32>
    %111 = vector.broadcast %12 : vector<8x1xf32> to vector<8x512xf32>
    %112 = arith.subf %110, %111 : vector<8x512xf32>
    %113 = vector.broadcast %14 : vector<8x1xf32> to vector<8x512xf32>
    %114 = arith.subf %112, %113 : vector<8x512xf32>
    %115 = arith.mulf %114, %114 : vector<8x512xf32>
    %116 = arith.addf %108, %115 : vector<8x512xf32>
    %cst_29 = arith.constant 4.000000e+00 : f32
    %117 = vector.broadcast %cst_29 : f32 to vector<8x512xf32>
    %118 = arith.divf %116, %117 : vector<8x512xf32>
    %119 = vector.broadcast %8 : vector<1x512xf32> to vector<8x512xf32>
    %120 = vector.broadcast %16 : vector<8x1xf32> to vector<8x512xf32>
    %121 = arith.subf %119, %120 : vector<8x512xf32>
    %122 = arith.mulf %121, %121 : vector<8x512xf32>
    %cst_30 = arith.constant 0.405284733 : f32
    %123 = vector.broadcast %cst_30 : f32 to vector<8x512xf32>
    %124 = arith.mulf %123, %122 : vector<8x512xf32>
    %125 = arith.subf %124, %82 : vector<8x512xf32>
    %cst_31 = arith.constant 1.00000012 : f32
    %126 = vector.broadcast %cst_31 : f32 to vector<8x512xf32>
    %127 = arith.addf %125, %126 : vector<8x512xf32>
    %128 = arith.divf %124, %127 : vector<8x512xf32>
    %129 = arith.divf %118, %101 : vector<8x512xf32>
    %130 = arith.mulf %124, %128 : vector<8x512xf32>
    %131 = arith.addf %129, %130 : vector<8x512xf32>
    %132 = arith.subf %82, %131 : vector<8x512xf32>
    %cst_32 = arith.constant 0.000000e+00 : f32
    %133 = vector.broadcast %cst_32 : f32 to vector<8x512xf32>
    %134 = arith.maximumf %132, %133 : vector<8x512xf32>
    %cst_33 = arith.constant 0.000000e+00 : f32
    %135 = vector.broadcast %cst_33 : f32 to vector<8x512xf32>
    %136 = arith.select %39, %134, %135 : vector<8x512xi1>, vector<8x512xf32>
    %137 = arith.mulf %136, %136 : vector<8x512xf32>
    %138 = arith.mulf %137, %136 : vector<8x512xf32>
    %139 = arith.mulf %138, %136 : vector<8x512xf32>
    %140 = arith.mulf %139, %136 : vector<8x512xf32>
    %141 = arith.mulf %140, %136 : vector<8x512xf32>
    %142 = arith.mulf %46, %141 : vector<8x512xf32>
    %143 = arith.extui %39 : vector<8x512xi1> to vector<8x512xi32>
    %144 = arith.sitofp %143 : vector<8x512xi32> to vector<8x512xf32>
    %c0_34 = arith.constant 0 : index
    %c0_35 = arith.constant 0 : index
    %c0_36 = arith.constant 0 : index
    %145 = vector.load %arg9[%c0_34, %c0_35, %c0_36] : memref<1x8x512xf32, #tpu.memory_space<vmem>>, vector<1x8x512xf32>
    %146 = vector.shape_cast %145 : vector<1x8x512xf32> to vector<8x512xf32>
    %147 = vector.shape_cast %144 : vector<8x512xf32> to vector<1x8x512xf32>
    tpu.vector_store %arg9[%c0_34, %c0_35, %c0_36], %147 {strides = array<i32>} : memref<1x8x512xf32, #tpu.memory_space<vmem>>, vector<1x8x512xf32>,
    %c0_37 = arith.constant 0 : index
    %c0_38 = arith.constant 0 : index
    %c0_39 = arith.constant 0 : index
    %148 = vector.load %arg10[%c0_37, %c0_38, %c0_39] : memref<1x8x512xf32, #tpu.memory_space<vmem>>, vector<1x8x512xf32>
    %149 = vector.shape_cast %148 : vector<1x8x512xf32> to vector<8x512xf32>
    %150 = vector.shape_cast %136 : vector<8x512xf32> to vector<1x8x512xf32>
    tpu.vector_store %arg10[%c0_37, %c0_38, %c0_39], %150 {strides = array<i32>} : memref<1x8x512xf32, #tpu.memory_space<vmem>>, vector<1x8x512xf32>,
    %c0_40 = arith.constant 0 : index
    %c0_41 = arith.constant 0 : index
    %c0_42 = arith.constant 0 : index
    %151 = vector.load %arg11[%c0_40, %c0_41, %c0_42] : memref<1x8x512xf32, #tpu.memory_space<vmem>>, vector<1x8x512xf32>
    %152 = vector.shape_cast %151 : vector<1x8x512xf32> to vector<8x512xf32>
    %153 = vector.shape_cast %142 : vector<8x512xf32> to vector<1x8x512xf32>
    tpu.vector_store %arg11[%c0_40, %c0_41, %c0_42], %153 {strides = array<i32>} : memref<1x8x512xf32, #tpu.memory_space<vmem>>, vector<1x8x512xf32>,
    return
  }
  func.func @transform_0(%arg0: i32, %arg1: i32) -> (i32, i32) {
    %c0_i32 = arith.constant 0 : i32
    %c0_i32_0 = arith.constant 0 : i32
    return %c0_i32, %arg1 : i32, i32
  }
  func.func @transform_1(%arg0: i32, %arg1: i32) -> (i32, i32, i32) {
    %c0_i32 = arith.constant 0 : i32
    %c0_i32_0 = arith.constant 0 : i32
    return %arg0, %c0_i32, %arg1 : i32, i32, i32
  }
  func.func @transform_2(%arg0: i32, %arg1: i32) -> (i32, i32, i32) {
    %c0_i32 = arith.constant 0 : i32
    %c0_i32_0 = arith.constant 0 : i32
    return %arg0, %c0_i32, %arg1 : i32, i32, i32
  }
  func.func @transform_3(%arg0: i32, %arg1: i32) -> (i32, i32, i32) {
    %c0_i32 = arith.constant 0 : i32
    %c0_i32_0 = arith.constant 0 : i32
    %c0_i32_1 = arith.constant 0 : i32
    return %arg0, %c0_i32, %c0_i32_0 : i32, i32, i32
  }
  func.func @transform_4(%arg0: i32, %arg1: i32) -> (i32, i32, i32) {
    %c0_i32 = arith.constant 0 : i32
    %c0_i32_0 = arith.constant 0 : i32
    %c0_i32_1 = arith.constant 0 : i32
    return %arg0, %c0_i32, %c0_i32_0 : i32, i32, i32
  }
  func.func @transform_5(%arg0: i32, %arg1: i32) -> (i32, i32, i32) {
    %c0_i32 = arith.constant 0 : i32
    %c0_i32_0 = arith.constant 0 : i32
    %c0_i32_1 = arith.constant 0 : i32
    return %arg0, %c0_i32, %c0_i32_0 : i32, i32, i32
  }
  func.func @transform_6(%arg0: i32, %arg1: i32) -> (i32, i32, i32) {
    %c0_i32 = arith.constant 0 : i32
    %c0_i32_0 = arith.constant 0 : i32
    %c0_i32_1 = arith.constant 0 : i32
    return %arg0, %c0_i32, %c0_i32_0 : i32, i32, i32
  }
  func.func @transform_7(%arg0: i32, %arg1: i32) -> (i32, i32, i32) {
    %c0_i32 = arith.constant 0 : i32
    %c0_i32_0 = arith.constant 0 : i32
    return %arg0, %c0_i32, %arg1 : i32, i32, i32
  }
  func.func @transform_8(%arg0: i32, %arg1: i32) -> (i32, i32, i32) {
    %c0_i32 = arith.constant 0 : i32
    %c0_i32_0 = arith.constant 0 : i32
    return %arg0, %c0_i32, %arg1 : i32, i32, i32
  }
  func.func @transform_9(%arg0: i32, %arg1: i32) -> (i32, i32, i32) {
    %c0_i32 = arith.constant 0 : i32
    %c0_i32_0 = arith.constant 0 : i32
    return %arg0, %c0_i32, %arg1 : i32, i32, i32
  }
}

</mosaic_0001>

<llo_original>
// kernel: tpu_custom_call.1
$region0: #{tpu_custom_call.1}
  #allocation0 [shape = 'u32[]', space=smem, size = 0x4, offset = 0x4, fixed_abs, tag = 'smem constant byte address 0x4 - core index']
  #allocation1 [shape = 'u32[72,128]{1,0:T(1,128)}', space=vmem, size = 0x9000, scoped, tag = 'internal scratch']
  %s0 = inlined_call_operand.vmem [shape: f32[2,1024], index: 0, kind: input, shape index: {}]
  %s1 = inlined_call_operand.vmem [shape: f32[2,5,1024], index: 1, kind: input, shape index: {}]
  %s2 = inlined_call_operand.hbm [shape: f32[2,16,1024], index: 2, kind: input, shape index: {}]
  %s3 = inlined_call_operand.vmem [shape: f32[2,8,16], index: 3, kind: input, shape index: {}]
  %s4 = inlined_call_operand.vmem [shape: f32[2,8,4], index: 4, kind: input, shape index: {}]
  %s5 = inlined_call_operand.vmem [shape: f32[2,8,1], index: 5, kind: input, shape index: {}]
  %s6 = inlined_call_operand.vmem [shape: f32[2,8,1], index: 6, kind: input, shape index: {}]
  %s7 = inlined_call_operand.hbm [shape: f32[2,8,1024], index: 7, kind: output, shape index: {0}]
  %s8 = inlined_call_operand.hbm [shape: f32[2,8,1024], index: 8, kind: output, shape index: {1}]
  %s9 = inlined_call_operand.hbm [shape: f32[2,8,1024], index: 9, kind: output, shape index: {2}]
  %10 = xla_tuple %s7, %s8, %s9
  %s11 = sld [smem:[#allocation0]]
  $region81: #{tpu_custom_call.1} parent=0
    _
  %s13 = ssub.s32 1, %s11
  %s14 = scalar_select 0, %s13, %s11
  $region1: #{tpu_custom_call.1} parent=0
    #allocation2 [shape = 'u8[65536]{0}', space=vmem, size = 0x10000, scoped, tag = 'input window, operand 2']
    #allocation3 [shape = 's32[2]{0}', space=sflag, size = 0x8, scoped, tag = 'scoped memory for tpu_custom_call.1']
    #allocation4 [shape = 's32[2]{0}', space=sflag, size = 0x8, scoped, tag = 'scoped memory for tpu_custom_call.1']
    #allocation5 [shape = 'u8[32768]{0}', space=vmem, size = 0x8000, scoped, tag = 'output window, operand 0']
    #allocation6 [shape = 'u8[32768]{0}', space=vmem, size = 0x8000, scoped, tag = 'output window, operand 1']
    #allocation7 [shape = 's32[2]{0}', space=sflag, size = 0x8, scoped, tag = 'scoped memory for tpu_custom_call.1']
    #allocation8 [shape = 'u8[32768]{0}', space=vmem, size = 0x8000, scoped, tag = 'output window, operand 2']
    %15 = vsyncpa [#allocation3], 0
    %s16 = scalar_lea.sflag [#allocation3], 1
    %17 = vsyncpa %s16, 0
    %18 = vsyncpa [#allocation4], 0
    %s19 = scalar_lea.sflag [#allocation4], 1
    %20 = vsyncpa %s19, 0
    %21 = vsyncpa [#allocation7], 0
    %s22 = scalar_lea.sflag [#allocation7], 1
    %23 = vsyncpa %s22, 0
    loop: start=0, step=1, limit=6
    $region2: #{tpu_custom_call.1} parent=1 // loop_pre_header
      _
    $region3: #{tpu_custom_call.1} parent=1 // loop_header
      %s25 = sphi 0, %s29
      %p26 = scmp.ge.s32.totalorder %s25, 6
      %s32 = sphi 0, %s44
      %s33 = sphi 0, %s40
      %s34 = sphi 0, %s32
      %s35 = sphi 0, %s33
      %s36 = sphi 0, %s34
      %s37 = sphi 0, %s35
      %s47 = sphi 0, %s49
      %s50 = sphi 0, %s47
      %s51 = sphi 0, %s50
      %s67 = sphi 0, %s51
      %s75 = sphi 0, %s77
      %s78 = sphi 0, %s75
      %s79 = sphi 0, %s78
      %s95 = sphi 0, %s79
      %s103 = sphi 0, %s105
      %s106 = sphi 0, %s103
      %s107 = sphi 0, %s106
      %s123 = sphi 0, %s107
      %s129 = sphi 0, %s131
      %s132 = sphi 0, %s129
      %s133 = sphi 0, %s132
      %s149 = sphi 0, %s133
      %s155 = sphi 0, %s157
      %s158 = sphi 0, %s155
      %s159 = sphi 0, %s158
      %s175 = sphi 0, %s159
      %s181 = sphi 0, %s183
      %s184 = sphi 0, %s181
      %s185 = sphi 0, %s184
      %s201 = sphi 0, %s185
      %s207 = sphi 0, %s209
      %s210 = sphi 0, %s207
      %s211 = sphi 0, %s210
      %s227 = sphi 0, %s211
      %s235 = sphi 0, %s237
      %s238 = sphi 0, %s235
      %s239 = sphi 0, %s238
      %s255 = sphi 0, %s239
      %s263 = sphi 0, %s265
      %s266 = sphi 0, %s263
      %s267 = sphi 0, %s266
      %s283 = sphi 0, %s267
      %s291 = sphi 0, %s293
      %s294 = sphi 0, %s291
      %s295 = sphi 0, %s294
      %s311 = sphi 0, %s295
    $region4: #{tpu_custom_call.1} parent=1 // loop_header_branch
      %28 = sbr.rel (%p26) target = $region8
    $region5: #{tpu_custom_call.1} parent=1 // loop_body
      %s30 = ssub.s32 %s25, 1
      %s31 = ssub.s32 %s25, 2
      %s38 = sadd.s32 1, %s33
      %p39 = scmp.ge.s32.totalorder %s38, 2
      %s40 = scalar_select %p39, 0, %s38
      %s41 = sadd.s32 1, %s32
      %s42 = scalar_select %p39, %s41, %s32
      %p43 = scmp.ge.s32.totalorder %s42, 2
      %s44 = scalar_select %p43, 0, %s42
      %s45 = ssub.s32 %s33, %s40
      %p46 = scmp.eq.s32.totalorder %s45, 0
      %s48 = sadd.s32 %s47, 1
      %s49 = scalar_select %p46, %s47, %s48
      %p52 = pneg %p46
      %p53 = scmp.eq.s32.totalorder %s25, 3
      %p54 = por %p52, %p53
      %p55 = scmp.ne.s32.totalorder %s47, %s50
      %p56 = scmp.eq.s32.totalorder %s25, 0
      %p57 = por %p55, %p56
      %p58 = scmp.ne.s32.totalorder %s47, %s50
      %p59 = scmp.eq.s32.totalorder %s30, 3
      %p60 = por %p58, %p59
      %p61 = scmp.ne.s32.totalorder %s50, %s51
      %p62 = scmp.eq.s32.totalorder %s30, 0
      %p63 = por %p61, %p62
      %p64 = scmp.ne.s32.totalorder %s50, %s51
      %p65 = scmp.eq.s32.totalorder %s31, 3
      %p66 = por %p64, %p65
      %p68 = scmp.ne.s32.totalorder %s51, %s67
      %p69 = scmp.eq.s32.totalorder %s31, 0
      %p70 = por %p68, %p69
      %s71 = ssub.s32 %s32, %s44
      %s72 = ssub.s32 %s33, %s40
      %s73 = sor.u32 %s71, %s72
      %p74 = scmp.eq.s32.totalorder %s73, 0
      %s76 = sadd.s32 %s75, 1
      %s77 = scalar_select %p74, %s75, %s76
      %p80 = pneg %p74
      %p81 = scmp.eq.s32.totalorder %s25, 3
      %p82 = por %p80, %p81
      %p83 = scmp.ne.s32.totalorder %s75, %s78
      %p84 = scmp.eq.s32.totalorder %s25, 0
      %p85 = por %p83, %p84
      %p86 = scmp.ne.s32.totalorder %s75, %s78
      %p87 = scmp.eq.s32.totalorder %s30, 3
      %p88 = por %p86, %p87
      %p89 = scmp.ne.s32.totalorder %s78, %s79
      %p90 = scmp.eq.s32.totalorder %s30, 0
      %p91 = por %p89, %p90
      %p92 = scmp.ne.s32.totalorder %s78, %s79
      %p93 = scmp.eq.s32.totalorder %s31, 3
      %p94 = por %p92, %p93
      %p96 = scmp.ne.s32.totalorder %s79, %s95
      %p97 = scmp.eq.s32.totalorder %s31, 0
      %p98 = por %p96, %p97
      %s99 = ssub.s32 %s32, %s44
      %s100 = ssub.s32 %s33, %s40
      %s101 = sor.u32 %s99, %s100
      %p102 = scmp.eq.s32.totalorder %s101, 0
      %s104 = sadd.s32 %s103, 1
      %s105 = scalar_select %p102, %s103, %s104
      %p108 = pneg %p102
      %p109 = scmp.eq.s32.totalorder %s25, 3
      %p110 = por %p108, %p109
      %p111 = scmp.ne.s32.totalorder %s103, %s106
      %p112 = scmp.eq.s32.totalorder %s25, 0
      %p113 = por %p111, %p112
      %p114 = scmp.ne.s32.totalorder %s103, %s106
      %p115 = scmp.eq.s32.totalorder %s30, 3
      %p116 = por %p114, %p115
      %p117 = scmp.ne.s32.totalorder %s106, %s107
      %p118 = scmp.eq.s32.totalorder %s30, 0
      %p119 = por %p117, %p118
      %p120 = scmp.ne.s32.totalorder %s106, %s107
      %p121 = scmp.eq.s32.totalorder %s31, 3
      %p122 = por %p120, %p121
      %p124 = scmp.ne.s32.totalorder %s107, %s123
      %p125 = scmp.eq.s32.totalorder %s31, 0
      %p126 = por %p124, %p125
      %s127 = ssub.s32 %s32, %s44
      %p128 = scmp.eq.s32.totalorder %s127, 0
      %s130 = sadd.s32 %s129, 1
      %s131 = scalar_select %p128, %s129, %s130
      %p134 = pneg %p128
      %p135 = scmp.eq.s32.totalorder %s25, 3
      %p136 = por %p134, %p135
      %p137 = scmp.ne.s32.totalorder %s129, %s132
      %p138 = scmp.eq.s32.totalorder %s25, 0
      %p139 = por %p137, %p138
      %p140 = scmp.ne.s32.totalorder %s129, %s132
      %p141 = scmp.eq.s32.totalorder %s30, 3
      %p142 = por %p140, %p141
      %p143 = scmp.ne.s32.totalorder %s132, %s133
      %p144 = scmp.eq.s32.totalorder %s30, 0
      %p145 = por %p143, %p144
      %p146 = scmp.ne.s32.totalorder %s132, %s133
      %p147 = scmp.eq.s32.totalorder %s31, 3
      %p148 = por %p146, %p147
      %p150 = scmp.ne.s32.totalorder %s133, %s149
      %p151 = scmp.eq.s32.totalorder %s31, 0
      %p152 = por %p150, %p151
      %s153 = ssub.s32 %s32, %s44
      %p154 = scmp.eq.s32.totalorder %s153, 0
      %s156 = sadd.s32 %s155, 1
      %s157 = scalar_select %p154, %s155, %s156
      %p160 = pneg %p154
      %p161 = scmp.eq.s32.totalorder %s25, 3
      %p162 = por %p160, %p161
      %p163 = scmp.ne.s32.totalorder %s155, %s158
      %p164 = scmp.eq.s32.totalorder %s25, 0
      %p165 = por %p163, %p164
      %p166 = scmp.ne.s32.totalorder %s155, %s158
      %p167 = scmp.eq.s32.totalorder %s30, 3
      %p168 = por %p166, %p167
      %p169 = scmp.ne.s32.totalorder %s158, %s159
      %p170 = scmp.eq.s32.totalorder %s30, 0
      %p171 = por %p169, %p170
      %p172 = scmp.ne.s32.totalorder %s158, %s159
      %p173 = scmp.eq.s32.totalorder %s31, 3
      %p174 = por %p172, %p173
      %p176 = scmp.ne.s32.totalorder %s159, %s175
      %p177 = scmp.eq.s32.totalorder %s31, 0
      %p178 = por %p176, %p177
      %s179 = ssub.s32 %s32, %s44
      %p180 = scmp.eq.s32.totalorder %s179, 0
      %s182 = sadd.s32 %s181, 1
      %s183 = scalar_select %p180, %s181, %s182
      %p186 = pneg %p180
      %p187 = scmp.eq.s32.totalorder %s25, 3
      %p188 = por %p186, %p187
      %p189 = scmp.ne.s32.totalorder %s181, %s184
      %p190 = scmp.eq.s32.totalorder %s25, 0
      %p191 = por %p189, %p190
      %p192 = scmp.ne.s32.totalorder %s181, %s184
      %p193 = scmp.eq.s32.totalorder %s30, 3
      %p194 = por %p192, %p193
      %p195 = scmp.ne.s32.totalorder %s184, %s185
      %p196 = scmp.eq.s32.totalorder %s30, 0
      %p197 = por %p195, %p196
      %p198 = scmp.ne.s32.totalorder %s184, %s185
      %p199 = scmp.eq.s32.totalorder %s31, 3
      %p200 = por %p198, %p199
      %p202 = scmp.ne.s32.totalorder %s185, %s201
      %p203 = scmp.eq.s32.totalorder %s31, 0
      %p204 = por %p202, %p203
      %s205 = ssub.s32 %s32, %s44
      %p206 = scmp.eq.s32.totalorder %s205, 0
      %s208 = sadd.s32 %s207, 1
      %s209 = scalar_select %p206, %s207, %s208
      %p212 = pneg %p206
      %p213 = scmp.eq.s32.totalorder %s25, 3
      %p214 = por %p212, %p213
      %p215 = scmp.ne.s32.totalorder %s207, %s210
      %p216 = scmp.eq.s32.totalorder %s25, 0
      %p217 = por %p215, %p216
      %p218 = scmp.ne.s32.totalorder %s207, %s210
      %p219 = scmp.eq.s32.totalorder %s30, 3
      %p220 = por %p218, %p219
      %p221 = scmp.ne.s32.totalorder %s210, %s211
      %p222 = scmp.eq.s32.totalorder %s30, 0
      %p223 = por %p221, %p222
      %p224 = scmp.ne.s32.totalorder %s210, %s211
      %p225 = scmp.eq.s32.totalorder %s31, 3
      %p226 = por %p224, %p225
      %p228 = scmp.ne.s32.totalorder %s211, %s227
      %p229 = scmp.eq.s32.totalorder %s31, 0
      %p230 = por %p228, %p229
      %s231 = ssub.s32 %s32, %s44
      %s232 = ssub.s32 %s33, %s40
      %s233 = sor.u32 %s231, %s232
      %p234 = scmp.eq.s32.totalorder %s233, 0
      %s236 = sadd.s32 %s235, 1
      %s237 = scalar_select %p234, %s235, %s236
      %p240 = pneg %p234
      %p241 = scmp.eq.s32.totalorder %s25, 3
      %p242 = por %p240, %p241
      %p243 = scmp.ne.s32.totalorder %s235, %s238
      %p244 = scmp.eq.s32.totalorder %s25, 0
      %p245 = por %p243, %p244
      %p246 = scmp.ne.s32.totalorder %s235, %s238
      %p247 = scmp.eq.s32.totalorder %s30, 3
      %p248 = por %p246, %p247
      %p249 = scmp.ne.s32.totalorder %s238, %s239
      %p250 = scmp.eq.s32.totalorder %s30, 0
      %p251 = por %p249, %p250
      %p252 = scmp.ne.s32.totalorder %s238, %s239
      %p253 = scmp.eq.s32.totalorder %s31, 3
      %p254 = por %p252, %p253
      %p256 = scmp.ne.s32.totalorder %s239, %s255
      %p257 = scmp.eq.s32.totalorder %s31, 0
      %p258 = por %p256, %p257
      %s259 = ssub.s32 %s32, %s44
      %s260 = ssub.s32 %s33, %s40
      %s261 = sor.u32 %s259, %s260
      %p262 = scmp.eq.s32.totalorder %s261, 0
      %s264 = sadd.s32 %s263, 1
      %s265 = scalar_select %p262, %s263, %s264
      %p268 = pneg %p262
      %p269 = scmp.eq.s32.totalorder %s25, 3
      %p270 = por %p268, %p269
      %p271 = scmp.ne.s32.totalorder %s263, %s266
      %p272 = scmp.eq.s32.totalorder %s25, 0
      %p273 = por %p271, %p272
      %p274 = scmp.ne.s32.totalorder %s263, %s266
      %p275 = scmp.eq.s32.totalorder %s30, 3
      %p276 = por %p274, %p275
      %p277 = scmp.ne.s32.totalorder %s266, %s267
      %p278 = scmp.eq.s32.totalorder %s30, 0
      %p279 = por %p277, %p278
      %p280 = scmp.ne.s32.totalorder %s266, %s267
      %p281 = scmp.eq.s32.totalorder %s31, 3
      %p282 = por %p280, %p281
      %p284 = scmp.ne.s32.totalorder %s267, %s283
      %p285 = scmp.eq.s32.totalorder %s31, 0
      %p286 = por %p284, %p285
      %s287 = ssub.s32 %s32, %s44
      %s288 = ssub.s32 %s33, %s40
      %s289 = sor.u32 %s287, %s288
      %p290 = scmp.eq.s32.totalorder %s289, 0
      %s292 = sadd.s32 %s291, 1
      %s293 = scalar_select %p290, %s291, %s292
      %p296 = pneg %p290
      %p297 = scmp.eq.s32.totalorder %s25, 3
      %p298 = por %p296, %p297
      %p299 = scmp.ne.s32.totalorder %s291, %s294
      %p300 = scmp.eq.s32.totalorder %s25, 0
      %p301 = por %p299, %p300
      %p302 = scmp.ne.s32.totalorder %s291, %s294
      %p303 = scmp.eq.s32.totalorder %s30, 3
      %p304 = por %p302, %p303
      %p305 = scmp.ne.s32.totalorder %s294, %s295
      %p306 = scmp.eq.s32.totalorder %s30, 0
      %p307 = por %p305, %p306
      %p308 = scmp.ne.s32.totalorder %s294, %s295
      %p309 = scmp.eq.s32.totalorder %s31, 3
      %p310 = por %p308, %p309
      %p312 = scmp.ne.s32.totalorder %s295, %s311
      %p313 = scmp.eq.s32.totalorder %s31, 0
      %p314 = por %p312, %p313
      %p315 = scmp.le.s32.totalorder 1, %s25
      %p316 = scmp.lt.s32.totalorder %s25, 5
      %p317 = pnand %p315, %p316
      %p318 = pneg %p317
      // Predicated region
      $region9: #{tpu_custom_call.1} parent=5 // pred_check
        _
      $region10: #{tpu_custom_call.1} parent=5 // pred_check_branch
        %320 = sbr.rel (%p317) target = $region12
      $region11: #{tpu_custom_call.1} parent=5 // pred_region
        %s321 = ssub.s32 %s25, 1
      $region12: #{tpu_custom_call.1} parent=5 // pred_fallthru
        _
      %p322 = scmp.lt.s32.totalorder %s25, 4
      // Predicated region
      $region13: #{tpu_custom_call.1} parent=5 // pred_check
        %p323 = pneg %p322
      $region14: #{tpu_custom_call.1} parent=5 // pred_check_branch
        %325 = sbr.rel (%p323) target = $region16
      $region15: #{tpu_custom_call.1} parent=5 // pred_region
        // Predicated region
        $region17: #{tpu_custom_call.1} parent=15 // pred_check
          %p326 = pneg %p57
        $region18: #{tpu_custom_call.1} parent=15 // pred_check_branch
          %328 = sbr.rel (%p326) target = $region20
        $region19: #{tpu_custom_call.1} parent=15 // pred_region
          %s329 = smul.u32 4, %s33
          %p330 = scmp.lt.s32.totalorder %s329, 7
          %s331 = scalar_select %p330, %s329, 7
          %s332 = smul.addr %s331, 2
          %s333 = scalar_lea.vmem %s0, %s332
          %s334 = smul.u32 4, %s33
        $region20: #{tpu_custom_call.1} parent=15 // pred_fallthru
          _
        // Predicated region
        $region21: #{tpu_custom_call.1} parent=15 // pred_check
          %p335 = pneg %p85
        $region22: #{tpu_custom_call.1} parent=15 // pred_check_branch
          %337 = sbr.rel (%p335) target = $region24
        $region23: #{tpu_custom_call.1} parent=15 // pred_region
          %s338 = smul.u32 4, %s33
          %p339 = scmp.lt.s32.totalorder %s32, 1
          %s340 = scalar_select %p339, %s32, 1
          %p341 = scmp.lt.s32.totalorder %s338, 7
          %s342 = scalar_select %p341, %s338, 7
          %s343 = smul.addr %s340, 8
          %s344 = sadd.s32 %s342, %s343
          %s345 = smul.addr %s344, 8
          %s346 = scalar_lea.vmem %s1, %s345
          %s347 = smul.u32 4, %s33
        $region24: #{tpu_custom_call.1} parent=15 // pred_fallthru
          _
        // Predicated region
        $region25: #{tpu_custom_call.1} parent=15 // pred_check
          %p348 = pneg %p113
        $region26: #{tpu_custom_call.1} parent=15 // pred_check_branch
          %350 = sbr.rel (%p348) target = $region28
        $region27: #{tpu_custom_call.1} parent=15 // pred_region
          %s351 = sand.u32 %s103, 1
          %s352 = scalar_lea.sflag [#allocation3], %s351
          %s353 = sand.u32 %s103, 1
          %s354 = smul.addr %s353, 64
          %s355 = scalar_lea.vmem [#allocation2], %s354
          %s356 = smul.u32 4, %s33
          %358 = vsyncadd %s352, 0
          %s359 = smul.addr %s32, 16
          %s360 = sadd.s32 %s356, %s359
          %s361 = smul.addr %s360, 8
          %s362 = scalar_lea.hbm %s2, %s361
          %s363 = sshll.u32 %s362, 4
          %s364 = int_to_ptr.hbm [resolvable:$true] %s363
          %s365 = sshll.u32 %s355, 4
          %s366 = int_to_ptr.vmem [resolvable:$true] %s365
          %371 = dma.hbm_to_vmem [thread:$0]  %s364, 1024, %s366, %s352, 1024, 512, 32
        $region28: #{tpu_custom_call.1} parent=15 // pred_fallthru
          _
        // Predicated region
        $region29: #{tpu_custom_call.1} parent=15 // pred_check
          %p372 = pneg %p139
        $region30: #{tpu_custom_call.1} parent=15 // pred_check_branch
          %374 = sbr.rel (%p372) target = $region32
        $region31: #{tpu_custom_call.1} parent=15 // pred_region
          %p375 = scmp.lt.s32.totalorder %s32, 1
          %s376 = scalar_select %p375, %s32, 1
          %s377 = smul.addr %s376, 8
          %s378 = scalar_lea.vmem %s3, %s377
        $region32: #{tpu_custom_call.1} parent=15 // pred_fallthru
          _
        // Predicated region
        $region33: #{tpu_custom_call.1} parent=15 // pred_check
          %p379 = pneg %p165
        $region34: #{tpu_custom_call.1} parent=15 // pred_check_branch
          %381 = sbr.rel (%p379) target = $region36
        $region35: #{tpu_custom_call.1} parent=15 // pred_region
          %p382 = scmp.lt.s32.totalorder %s32, 1
          %s383 = scalar_select %p382, %s32, 1
          %s384 = smul.addr %s383, 8
          %s385 = scalar_lea.vmem %s4, %s384
        $region36: #{tpu_custom_call.1} parent=15 // pred_fallthru
          _
        // Predicated region
        $region37: #{tpu_custom_call.1} parent=15 // pred_check
          %p386 = pneg %p191
        $region38: #{tpu_custom_call.1} parent=15 // pred_check_branch
          %388 = sbr.rel (%p386) target = $region40
        $region39: #{tpu_custom_call.1} parent=15 // pred_region
          %p389 = scmp.lt.s32.totalorder %s32, 1
          %s390 = scalar_select %p389, %s32, 1
          %s391 = smul.addr %s390, 8
          %s392 = scalar_lea.vmem %s5, %s391
        $region40: #{tpu_custom_call.1} parent=15 // pred_fallthru
          _
        // Predicated region
        $region41: #{tpu_custom_call.1} parent=15 // pred_check
          %p393 = pneg %p217
        $region42: #{tpu_custom_call.1} parent=15 // pred_check_branch
          %395 = sbr.rel (%p393) target = $region44
        $region43: #{tpu_custom_call.1} parent=15 // pred_region
          %p396 = scmp.lt.s32.totalorder %s32, 1
          %s397 = scalar_select %p396, %s32, 1
          %s398 = smul.addr %s397, 8
          %s399 = scalar_lea.vmem %s6, %s398
        $region44: #{tpu_custom_call.1} parent=15 // pred_fallthru
          _
      $region16: #{tpu_custom_call.1} parent=5 // pred_fallthru
        _
      %p400 = scmp.le.s32.totalorder 1, %s25
      %p401 = scmp.lt.s32.totalorder %s25, 5
      %p402 = pnand %p400, %p401
      %p403 = pneg %p402
      // Predicated region
      $region45: #{tpu_custom_call.1} parent=5 // pred_check
        _
      $region46: #{tpu_custom_call.1} parent=5 // pred_check_branch
        %405 = sbr.rel (%p402) target = $region48
      $region47: #{tpu_custom_call.1} parent=5 // pred_region
        %s406 = ssub.s32 %s25, 1
        %s407 = sand.u32 %s106, 1
        %s408 = scalar_lea.sflag [#allocation3], %s407
        %s409 = sand.u32 %s106, 1
        %s410 = smul.addr %s409, 64
        %s411 = scalar_lea.vmem [#allocation2], %s410
        // Predicated region
        $region49: #{tpu_custom_call.1} parent=47 // pred_check
          %p412 = pneg %p119
        $region50: #{tpu_custom_call.1} parent=47 // pred_check_branch
          %414 = sbr.rel (%p412) target = $region52
        $region51: #{tpu_custom_call.1} parent=47 // pred_region
          %416 = dma.done %s408, 1024
        $region52: #{tpu_custom_call.1} parent=47 // pred_fallthru
          _
        %s417 = smul.u32 4, %s35
        %p418 = scmp.lt.s32.totalorder %s417, 7
        %s419 = scalar_select %p418, %s417, 7
        %s420 = smul.addr %s419, 2
        %s421 = scalar_lea.vmem %s0, %s420
        %p422 = pneg %p63
        %p423 = pneg %p60
        %s424 = smul.u32 4, %s35
        %p425 = scmp.lt.s32.totalorder %s34, 1
        %s426 = scalar_select %p425, %s34, 1
        %p427 = scmp.lt.s32.totalorder %s424, 7
        %s428 = scalar_select %p427, %s424, 7
        %s429 = smul.addr %s426, 8
        %s430 = sadd.s32 %s428, %s429
        %s431 = smul.addr %s430, 8
        %s432 = scalar_lea.vmem %s1, %s431
        %p433 = pneg %p91
        %p434 = pneg %p88
        %s435 = sand.u32 %s106, 1
        %s436 = scalar_lea.sflag [#allocation3], %s435
        %s437 = sand.u32 %s106, 1
        %s438 = smul.addr %s437, 64
        %s439 = scalar_lea.vmem [#allocation2], %s438
        %p440 = pneg %p119
        %p441 = pneg %p116
        %p442 = scmp.lt.s32.totalorder %s34, 1
        %s443 = scalar_select %p442, %s34, 1
        %s444 = smul.addr %s443, 8
        %s445 = scalar_lea.vmem %s3, %s444
        %p446 = pneg %p145
        %p447 = pneg %p142
        %p448 = scmp.lt.s32.totalorder %s34, 1
        %s449 = scalar_select %p448, %s34, 1
        %s450 = smul.addr %s449, 8
        %s451 = scalar_lea.vmem %s4, %s450
        %p452 = pneg %p171
        %p453 = pneg %p168
        %p454 = scmp.lt.s32.totalorder %s34, 1
        %s455 = scalar_select %p454, %s34, 1
        %s456 = smul.addr %s455, 8
        %s457 = scalar_lea.vmem %s5, %s456
        %p458 = pneg %p197
        %p459 = pneg %p194
        %p460 = scmp.lt.s32.totalorder %s34, 1
        %s461 = scalar_select %p460, %s34, 1
        %s462 = smul.addr %s461, 8
        %s463 = scalar_lea.vmem %s6, %s462
        %p464 = pneg %p223
        %p465 = pneg %p220
        %p466 = pneg %p251
        %p467 = pneg %p248
        %s468 = sand.u32 %s238, 1
        %s469 = scalar_lea.sflag [#allocation4], %s468
        %s470 = sand.u32 %s238, 1
        %s471 = smul.addr %s470, 32
        %s472 = scalar_lea.vmem [#allocation5], %s471
        %p473 = pneg %p279
        %p474 = pneg %p276
        %s475 = sand.u32 %s30, 1
        %s476 = scalar_lea.sflag [#allocation7], %s475
        %s477 = sand.u32 %s266, 1
        %s478 = smul.addr %s477, 32
        %s479 = scalar_lea.vmem [#allocation6], %s478
        %p480 = pneg %p307
        %p481 = pneg %p304
        %s482 = sand.u32 %s30, 1
        %s483 = scalar_lea.sflag [#allocation7], %s482
        %s484 = sand.u32 %s294, 1
        %s485 = smul.addr %s484, 32
        %s486 = scalar_lea.vmem [#allocation8], %s485
        %s487 = smul.u32 4, %s35
        %p488 = scmp.lt.s32.totalorder %s487, 7
        %s489 = scalar_select %p488, %s487, 7
        %s490 = smul.addr %s489, 2
        %s491 = scalar_lea.vmem %s0, %s490
        %s492 = smul.u32 4, %s35
        %s493 = smul.u32 4, %s35
        %p494 = scmp.lt.s32.totalorder %s34, 1
        %s495 = scalar_select %p494, %s34, 1
        %p496 = scmp.lt.s32.totalorder %s493, 7
        %s497 = scalar_select %p496, %s493, 7
        %s498 = smul.addr %s495, 8
        %s499 = sadd.s32 %s497, %s498
        %s500 = smul.addr %s499, 8
        %s501 = scalar_lea.vmem %s1, %s500
        %s502 = smul.u32 4, %s35
        %s503 = smul.u32 4, %s35
        %p504 = scmp.lt.s32.totalorder %s34, 1
        %s505 = scalar_select %p504, %s34, 1
        %s506 = smul.addr %s505, 8
        %s507 = scalar_lea.vmem %s3, %s506
        %p508 = scmp.lt.s32.totalorder %s34, 1
        %s509 = scalar_select %p508, %s34, 1
        %s510 = smul.addr %s509, 8
        %s511 = scalar_lea.vmem %s4, %s510
        %p512 = scmp.lt.s32.totalorder %s34, 1
        %s513 = scalar_select %p512, %s34, 1
        %s514 = smul.addr %s513, 8
        %s515 = scalar_lea.vmem %s5, %s514
        %p516 = scmp.lt.s32.totalorder %s34, 1
        %s517 = scalar_select %p516, %s34, 1
        %s518 = smul.addr %s517, 8
        %s519 = scalar_lea.vmem %s6, %s518
        %s520 = smul.u32 4, %s35
        %s521 = smul.u32 4, %s35
        %s522 = smul.u32 4, %s35
        %v523 = vld [vmem:[%s491] ss:$2 sm:$0xf]
        %s524 = scalar_lea.vmem %s491, 1
        %v525 = vld [vmem:[%s524] ss:$2 sm:$0xf]
        %v526 = vld [vmem:[%s501] sm:$0x1f]
        %v527 = vld [vmem:[%s501 + $0x8] sm:$0x1f]
        %v528 = vld [vmem:[%s501 + $0x10] sm:$0x1f]
        %v529 = vld [vmem:[%s501 + $0x18] sm:$0x1f]
        %v530 = vld [vmem:[%s511] sm:$0xff]
        %v531 = vld [vmem:[%s515] sm:$0xff]
        %v532 = vld [vmem:[%s519] sm:$0xff]
        %vm533 = vcmp.gt.f32.partialorder %v532, 0.0
        %v535 = vperm.slane %v523, 0
        %v536 = vperm.slane %v523, 1
        %v537 = vperm.slane %v523, 2
        %v538 = vperm.slane %v523, 3
        %544 = vset.pattern.permute.xlu0 0
        %545 = vperm.xlu0 %544, %v530
        %v546 = vpop.permute.xlu0 %545
        %v548 = vsub.f32 %v535, %v546
        %v549 = vsub.f32 %v536, %v546
        %v550 = vsub.f32 %v537, %v546
        %v551 = vsub.f32 %v538, %v546
        %v553 = vperm.slane %v525, 0
        %v554 = vperm.slane %v525, 1
        %v555 = vperm.slane %v525, 2
        %v556 = vperm.slane %v525, 3
        %561 = vset.pattern.permute.xlu0 1
        %562 = vperm.xlu0 %561, %v530
        %v563 = vpop.permute.xlu0 %562
        %v565 = vsub.f32 %v553, %v563
        %v566 = vsub.f32 %v554, %v563
        %v567 = vsub.f32 %v555, %v563
        %v568 = vsub.f32 %v556, %v563
        %569 = vset.pattern.permute.xlu0 2
        %570 = vperm.xlu0 %569, %v530
        %v571 = vpop.permute.xlu0 %570
        %v573 = vsub.f32 %v571, %v535
        %v574 = vsub.f32 %v571, %v536
        %v575 = vsub.f32 %v571, %v537
        %v576 = vsub.f32 %v571, %v538
        %577 = vset.pattern.permute.xlu0 3
        %578 = vperm.xlu0 %577, %v530
        %v579 = vpop.permute.xlu0 %578
        %v581 = vsub.f32 %v579, %v553
        %v582 = vsub.f32 %v579, %v554
        %v583 = vsub.f32 %v579, %v555
        %v584 = vsub.f32 %v579, %v556
        %v585 = vmin.f32 %v548, %v565
        %v586 = vmin.f32 %v549, %v566
        %v587 = vmin.f32 %v550, %v567
        %v588 = vmin.f32 %v551, %v568
        %v589 = vmin.f32 %v573, %v581
        %v590 = vmin.f32 %v574, %v582
        %v591 = vmin.f32 %v575, %v583
        %v592 = vmin.f32 %v576, %v584
        %v593 = vmin.f32 %v585, %v589
        %v594 = vmin.f32 %v586, %v590
        %v595 = vmin.f32 %v587, %v591
        %v596 = vmin.f32 %v588, %v592
        %vm597 = vcmp.gt.f32.partialorder %v593, 1e-09
        %vm598 = vcmp.gt.f32.partialorder %v594, 1e-09
        %vm599 = vcmp.gt.f32.partialorder %v595, 1e-09
        %vm600 = vcmp.gt.f32.partialorder %v596, 1e-09
        %v601 = vsel %vm533, 1, 0
        %602 = vset.pattern.permute.xlu0 0
        %603 = vperm.xlu0 %602, %v601
        %v604 = vpop.permute.xlu0 %603
        %vm605 = vcmp.eq.s32.totalorder %v604, 1
        %vm606 = vmand %vm597, %vm605
        %vm607 = vmand %vm598, %vm605
        %vm608 = vmand %vm599, %vm605
        %vm609 = vmand %vm600, %vm605
        %v610 = vld [vmem:[%s507] sm:$0xff]
        %v611 = vld [vmem:[%s411] sm:$0xff]
        %v612 = vld [vmem:[%s411 + $0x8] sm:$0xff]
        %v613 = vld [vmem:[%s411 + $0x10] sm:$0xff]
        %v614 = vld [vmem:[%s411 + $0x18] sm:$0xff]
        %v615 = vld [vmem:[%s411 + $0x20] sm:$0xff]
        %v616 = vld [vmem:[%s411 + $0x28] sm:$0xff]
        %v617 = vld [vmem:[%s411 + $0x30] sm:$0xff]
        %v618 = vld [vmem:[%s411 + $0x38] sm:$0xff]
        %vm619 = vcmask 130048
        %v621 = vsel %vm619, %v610, 0
        %623 = vmatpush.msra.mxu0 0.0
        %624 = vmatpush.msra.mxu0 0.0
        %625 = vmatpush.msra.mxu0 0.0
        %626 = vmatpush.msra.mxu0 0.0
        %627 = vmatpush.msra.mxu0 0.0
        %628 = vmatpush.msra.mxu0 0.0
        %629 = vmatpush.msra.mxu0 0.0
        %630 = vmatpush.msra.mxu0 0.0
        %631 = vmatpush.msra.mxu0 0.0
        %632 = vmatpush.msra.mxu0 0.0
        %633 = vmatpush.msra.mxu0 0.0
        %634 = vmatpush.msra.mxu0 0.0
        %635 = vmatpush.msra.mxu0 0.0
        %636 = vmatpush.msra.mxu0 0.0
        %v637 = vand.u32 %v615, 4294901760
        %638 = vmatpush.msra.mxu0 %v637
        %v639 = vand.u32 %v611, 4294901760
        %640 = vmatpush.msra.mxu0 %v639
        %v641 = vand.u32 %v621, 4294901760
        %v642 = vsub.f32 %v621, %v641
        %v643 = vand.u32 %v642, 4294901760
        %v644 = vsub.f32 %v642, %v643
        %v645 = vand.u32 %v644, 4294901760
        %646 = vmatmul.f32.gmra.mxu0 %v645
        %v647 = vpop.f32.mrf.mxu0
        %v648 = vadd.f32 0.0, %v647
        %649 = vdwg.mxu0
        %650 = vmatpush.msra.mxu0 0.0
        %651 = vmatpush.msra.mxu0 0.0
        %652 = vmatpush.msra.mxu0 0.0
        %653 = vmatpush.msra.mxu0 0.0
        %654 = vmatpush.msra.mxu0 0.0
        %655 = vmatpush.msra.mxu0 0.0
        %656 = vmatpush.msra.mxu0 0.0
        %657 = vmatpush.msra.mxu0 0.0
        %658 = vmatpush.msra.mxu0 0.0
        %659 = vmatpush.msra.mxu0 0.0
        %660 = vmatpush.msra.mxu0 0.0
        %661 = vmatpush.msra.mxu0 0.0
        %662 = vmatpush.msra.mxu0 0.0
        %663 = vmatpush.msra.mxu0 0.0
        %v664 = vand.u32 %v615, 4294901760
        %v665 = vsub.f32 %v615, %v664
        %v666 = vand.u32 %v665, 4294901760
        %v667 = vsub.f32 %v665, %v666
        %v668 = vand.u32 %v667, 4294901760
        %669 = vmatpush.msra.mxu0 %v668
        %v670 = vand.u32 %v611, 4294901760
        %v671 = vsub.f32 %v611, %v670
        %v672 = vand.u32 %v671, 4294901760
        %v673 = vsub.f32 %v671, %v672
        %v674 = vand.u32 %v673, 4294901760
        %675 = vmatpush.msra.mxu0 %v674
        %v676 = vand.u32 %v621, 4294901760
        %677 = vmatmul.f32.gmra.mxu0 %v676
        %v678 = vpop.f32.mrf.mxu0
        %v679 = vadd.f32 %v648, %v678
        %680 = vdwg.mxu0
        %681 = vmatpush.msra.mxu0 0.0
        %682 = vmatpush.msra.mxu0 0.0
        %683 = vmatpush.msra.mxu0 0.0
        %684 = vmatpush.msra.mxu0 0.0
        %685 = vmatpush.msra.mxu0 0.0
        %686 = vmatpush.msra.mxu0 0.0
        %687 = vmatpush.msra.mxu0 0.0
        %688 = vmatpush.msra.mxu0 0.0
        %689 = vmatpush.msra.mxu0 0.0
        %690 = vmatpush.msra.mxu0 0.0
        %691 = vmatpush.msra.mxu0 0.0
        %692 = vmatpush.msra.mxu0 0.0
        %693 = vmatpush.msra.mxu0 0.0
        %694 = vmatpush.msra.mxu0 0.0
        %v695 = vand.u32 %v615, 4294901760
        %v696 = vsub.f32 %v615, %v695
        %697 = vmatpush.msra.mxu0 %v696
        %v698 = vand.u32 %v611, 4294901760
        %v699 = vsub.f32 %v611, %v698
        %700 = vmatpush.msra.mxu0 %v699
        %v701 = vand.u32 %v621, 4294901760
        %v702 = vsub.f32 %v621, %v701
        %703 = vmatmul.f32.gmra.mxu0 %v702
        %v704 = vpop.f32.mrf.mxu0
        %v705 = vadd.f32 %v679, %v704
        %706 = vdwg.mxu0
        %707 = vmatpush.msra.mxu0 0.0
        %708 = vmatpush.msra.mxu0 0.0
        %709 = vmatpush.msra.mxu0 0.0
        %710 = vmatpush.msra.mxu0 0.0
        %711 = vmatpush.msra.mxu0 0.0
        %712 = vmatpush.msra.mxu0 0.0
        %713 = vmatpush.msra.mxu0 0.0
        %714 = vmatpush.msra.mxu0 0.0
        %715 = vmatpush.msra.mxu0 0.0
        %716 = vmatpush.msra.mxu0 0.0
        %717 = vmatpush.msra.mxu0 0.0
        %718 = vmatpush.msra.mxu0 0.0
        %719 = vmatpush.msra.mxu0 0.0
        %720 = vmatpush.msra.mxu0 0.0
        %v721 = vand.u32 %v615, 4294901760
        %722 = vmatpush.msra.mxu0 %v721
        %v723 = vand.u32 %v611, 4294901760
        %724 = vmatpush.msra.mxu0 %v723
        %v725 = vand.u32 %v621, 4294901760
        %v726 = vsub.f32 %v621, %v725
        %v727 = vand.u32 %v726, 4294901760
        %728 = vmatmul.f32.gmra.mxu0 %v727
        %v729 = vpop.f32.mrf.mxu0
        %v730 = vadd.f32 %v705, %v729
        %731 = vdwg.mxu0
        %732 = vmatpush.msra.mxu0 0.0
        %733 = vmatpush.msra.mxu0 0.0
        %734 = vmatpush.msra.mxu0 0.0
        %735 = vmatpush.msra.mxu0 0.0
        %736 = vmatpush.msra.mxu0 0.0
        %737 = vmatpush.msra.mxu0 0.0
        %738 = vmatpush.msra.mxu0 0.0
        %739 = vmatpush.msra.mxu0 0.0
        %740 = vmatpush.msra.mxu0 0.0
        %741 = vmatpush.msra.mxu0 0.0
        %742 = vmatpush.msra.mxu0 0.0
        %743 = vmatpush.msra.mxu0 0.0
        %744 = vmatpush.msra.mxu0 0.0
        %745 = vmatpush.msra.mxu0 0.0
        %v746 = vand.u32 %v615, 4294901760
        %v747 = vsub.f32 %v615, %v746
        %v748 = vand.u32 %v747, 4294901760
        %749 = vmatpush.msra.mxu0 %v748
        %v750 = vand.u32 %v611, 4294901760
        %v751 = vsub.f32 %v611, %v750
        %v752 = vand.u32 %v751, 4294901760
        %753 = vmatpush.msra.mxu0 %v752
        %v754 = vand.u32 %v621, 4294901760
        %755 = vmatmul.f32.gmra.mxu0 %v754
        %v756 = vpop.f32.mrf.mxu0
        %v757 = vadd.f32 %v730, %v756
        %758 = vdwg.mxu0
        %759 = vmatpush.msra.mxu0 0.0
        %760 = vmatpush.msra.mxu0 0.0
        %761 = vmatpush.msra.mxu0 0.0
        %762 = vmatpush.msra.mxu0 0.0
        %763 = vmatpush.msra.mxu0 0.0
        %764 = vmatpush.msra.mxu0 0.0
        %765 = vmatpush.msra.mxu0 0.0
        %766 = vmatpush.msra.mxu0 0.0
        %767 = vmatpush.msra.mxu0 0.0
        %768 = vmatpush.msra.mxu0 0.0
        %769 = vmatpush.msra.mxu0 0.0
        %770 = vmatpush.msra.mxu0 0.0
        %771 = vmatpush.msra.mxu0 0.0
        %772 = vmatpush.msra.mxu0 0.0
        %v773 = vand.u32 %v615, 4294901760
        %774 = vmatpush.msra.mxu0 %v773
        %v775 = vand.u32 %v611, 4294901760
        %776 = vmatpush.msra.mxu0 %v775
        %v777 = vand.u32 %v621, 4294901760
        %778 = vmatmul.f32.gmra.mxu0 %v777
        %v779 = vpop.f32.mrf.mxu0
        %v780 = vadd.f32 %v757, %v779
        %781 = vdwg.mxu0
        %782 = vmatpush.msra.mxu0 0.0
        %783 = vmatpush.msra.mxu0 0.0
        %784 = vmatpush.msra.mxu0 0.0
        %785 = vmatpush.msra.mxu0 0.0
        %786 = vmatpush.msra.mxu0 0.0
        %787 = vmatpush.msra.mxu0 0.0
        %788 = vmatpush.msra.mxu0 0.0
        %789 = vmatpush.msra.mxu0 0.0
        %790 = vmatpush.msra.mxu0 0.0
        %791 = vmatpush.msra.mxu0 0.0
        %792 = vmatpush.msra.mxu0 0.0
        %793 = vmatpush.msra.mxu0 0.0
        %794 = vmatpush.msra.mxu0 0.0
        %795 = vmatpush.msra.mxu0 0.0
        %v796 = vand.u32 %v616, 4294901760
        %797 = vmatpush.msra.mxu0 %v796
        %v798 = vand.u32 %v612, 4294901760
        %799 = vmatpush.msra.mxu0 %v798
        %v800 = vand.u32 %v621, 4294901760
        %v801 = vsub.f32 %v621, %v800
        %v802 = vand.u32 %v801, 4294901760
        %v803 = vsub.f32 %v801, %v802
        %v804 = vand.u32 %v803, 4294901760
        %805 = vmatmul.f32.gmra.mxu0 %v804
        %v806 = vpop.f32.mrf.mxu0
        %v807 = vadd.f32 0.0, %v806
        %808 = vdwg.mxu0
        %809 = vmatpush.msra.mxu0 0.0
        %810 = vmatpush.msra.mxu0 0.0
        %811 = vmatpush.msra.mxu0 0.0
        %812 = vmatpush.msra.mxu0 0.0
        %813 = vmatpush.msra.mxu0 0.0
        %814 = vmatpush.msra.mxu0 0.0
        %815 = vmatpush.msra.mxu0 0.0
        %816 = vmatpush.msra.mxu0 0.0
        %817 = vmatpush.msra.mxu0 0.0
        %818 = vmatpush.msra.mxu0 0.0
        %819 = vmatpush.msra.mxu0 0.0
        %820 = vmatpush.msra.mxu0 0.0
        %821 = vmatpush.msra.mxu0 0.0
        %822 = vmatpush.msra.mxu0 0.0
        %v823 = vand.u32 %v616, 4294901760
        %v824 = vsub.f32 %v616, %v823
        %v825 = vand.u32 %v824, 4294901760
        %v826 = vsub.f32 %v824, %v825
        %v827 = vand.u32 %v826, 4294901760
        %828 = vmatpush.msra.mxu0 %v827
        %v829 = vand.u32 %v612, 4294901760
        %v830 = vsub.f32 %v612, %v829
        %v831 = vand.u32 %v830, 4294901760
        %v832 = vsub.f32 %v830, %v831
        %v833 = vand.u32 %v832, 4294901760
        %834 = vmatpush.msra.mxu0 %v833
        %v835 = vand.u32 %v621, 4294901760
        %836 = vmatmul.f32.gmra.mxu0 %v835
        %v837 = vpop.f32.mrf.mxu0
        %v838 = vadd.f32 %v807, %v837
        %839 = vdwg.mxu0
        %840 = vmatpush.msra.mxu0 0.0
        %841 = vmatpush.msra.mxu0 0.0
        %842 = vmatpush.msra.mxu0 0.0
        %843 = vmatpush.msra.mxu0 0.0
        %844 = vmatpush.msra.mxu0 0.0
        %845 = vmatpush.msra.mxu0 0.0
        %846 = vmatpush.msra.mxu0 0.0
        %847 = vmatpush.msra.mxu0 0.0
        %848 = vmatpush.msra.mxu0 0.0
        %849 = vmatpush.msra.mxu0 0.0
        %850 = vmatpush.msra.mxu0 0.0
        %851 = vmatpush.msra.mxu0 0.0
        %852 = vmatpush.msra.mxu0 0.0
        %853 = vmatpush.msra.mxu0 0.0
        %v854 = vand.u32 %v616, 4294901760
        %v855 = vsub.f32 %v616, %v854
        %856 = vmatpush.msra.mxu0 %v855
        %v857 = vand.u32 %v612, 4294901760
        %v858 = vsub.f32 %v612, %v857
        %859 = vmatpush.msra.mxu0 %v858
        %v860 = vand.u32 %v621, 4294901760
        %v861 = vsub.f32 %v621, %v860
        %862 = vmatmul.f32.gmra.mxu0 %v861
        %v863 = vpop.f32.mrf.mxu0
        %v864 = vadd.f32 %v838, %v863
        %865 = vdwg.mxu0
        %866 = vmatpush.msra.mxu0 0.0
        %867 = vmatpush.msra.mxu0 0.0
        %868 = vmatpush.msra.mxu0 0.0
        %869 = vmatpush.msra.mxu0 0.0
        %870 = vmatpush.msra.mxu0 0.0
        %871 = vmatpush.msra.mxu0 0.0
        %872 = vmatpush.msra.mxu0 0.0
        %873 = vmatpush.msra.mxu0 0.0
        %874 = vmatpush.msra.mxu0 0.0
        %875 = vmatpush.msra.mxu0 0.0
        %876 = vmatpush.msra.mxu0 0.0
        %877 = vmatpush.msra.mxu0 0.0
        %878 = vmatpush.msra.mxu0 0.0
        %879 = vmatpush.msra.mxu0 0.0
        %v880 = vand.u32 %v616, 4294901760
        %881 = vmatpush.msra.mxu0 %v880
        %v882 = vand.u32 %v612, 4294901760
        %883 = vmatpush.msra.mxu0 %v882
        %v884 = vand.u32 %v621, 4294901760
        %v885 = vsub.f32 %v621, %v884
        %v886 = vand.u32 %v885, 4294901760
        %887 = vmatmul.f32.gmra.mxu0 %v886
        %v888 = vpop.f32.mrf.mxu0
        %v889 = vadd.f32 %v864, %v888
        %890 = vdwg.mxu0
        %891 = vmatpush.msra.mxu0 0.0
        %892 = vmatpush.msra.mxu0 0.0
        %893 = vmatpush.msra.mxu0 0.0
        %894 = vmatpush.msra.mxu0 0.0
        %895 = vmatpush.msra.mxu0 0.0
        %896 = vmatpush.msra.mxu0 0.0
        %897 = vmatpush.msra.mxu0 0.0
        %898 = vmatpush.msra.mxu0 0.0
        %899 = vmatpush.msra.mxu0 0.0
        %900 = vmatpush.msra.mxu0 0.0
        %901 = vmatpush.msra.mxu0 0.0
        %902 = vmatpush.msra.mxu0 0.0
        %903 = vmatpush.msra.mxu0 0.0
        %904 = vmatpush.msra.mxu0 0.0
        %v905 = vand.u32 %v616, 4294901760
        %v906 = vsub.f32 %v616, %v905
        %v907 = vand.u32 %v906, 4294901760
        %908 = vmatpush.msra.mxu0 %v907
        %v909 = vand.u32 %v612, 4294901760
        %v910 = vsub.f32 %v612, %v909
        %v911 = vand.u32 %v910, 4294901760
        %912 = vmatpush.msra.mxu0 %v911
        %v913 = vand.u32 %v621, 4294901760
        %914 = vmatmul.f32.gmra.mxu0 %v913
        %v915 = vpop.f32.mrf.mxu0
        %v916 = vadd.f32 %v889, %v915
        %917 = vdwg.mxu0
        %918 = vmatpush.msra.mxu0 0.0
        %919 = vmatpush.msra.mxu0 0.0
        %920 = vmatpush.msra.mxu0 0.0
        %921 = vmatpush.msra.mxu0 0.0
        %922 = vmatpush.msra.mxu0 0.0
        %923 = vmatpush.msra.mxu0 0.0
        %924 = vmatpush.msra.mxu0 0.0
        %925 = vmatpush.msra.mxu0 0.0
        %926 = vmatpush.msra.mxu0 0.0
        %927 = vmatpush.msra.mxu0 0.0
        %928 = vmatpush.msra.mxu0 0.0
        %929 = vmatpush.msra.mxu0 0.0
        %930 = vmatpush.msra.mxu0 0.0
        %931 = vmatpush.msra.mxu0 0.0
        %v932 = vand.u32 %v616, 4294901760
        %933 = vmatpush.msra.mxu0 %v932
        %v934 = vand.u32 %v612, 4294901760
        %935 = vmatpush.msra.mxu0 %v934
        %v936 = vand.u32 %v621, 4294901760
        %937 = vmatmul.f32.gmra.mxu0 %v936
        %v938 = vpop.f32.mrf.mxu0
        %v939 = vadd.f32 %v916, %v938
        %940 = vdwg.mxu0
        %941 = vmatpush.msra.mxu0 0.0
        %942 = vmatpush.msra.mxu0 0.0
        %943 = vmatpush.msra.mxu0 0.0
        %944 = vmatpush.msra.mxu0 0.0
        %945 = vmatpush.msra.mxu0 0.0
        %946 = vmatpush.msra.mxu0 0.0
        %947 = vmatpush.msra.mxu0 0.0
        %948 = vmatpush.msra.mxu0 0.0
        %949 = vmatpush.msra.mxu0 0.0
        %950 = vmatpush.msra.mxu0 0.0
        %951 = vmatpush.msra.mxu0 0.0
        %952 = vmatpush.msra.mxu0 0.0
        %953 = vmatpush.msra.mxu0 0.0
        %954 = vmatpush.msra.mxu0 0.0
        %v955 = vand.u32 %v617, 4294901760
        %956 = vmatpush.msra.mxu0 %v955
        %v957 = vand.u32 %v613, 4294901760
        %958 = vmatpush.msra.mxu0 %v957
        %v959 = vand.u32 %v621, 4294901760
        %v960 = vsub.f32 %v621, %v959
        %v961 = vand.u32 %v960, 4294901760
        %v962 = vsub.f32 %v960, %v961
        %v963 = vand.u32 %v962, 4294901760
        %964 = vmatmul.f32.gmra.mxu0 %v963
        %v965 = vpop.f32.mrf.mxu0
        %v966 = vadd.f32 0.0, %v965
        %967 = vdwg.mxu0
        %968 = vmatpush.msra.mxu0 0.0
        %969 = vmatpush.msra.mxu0 0.0
        %970 = vmatpush.msra.mxu0 0.0
        %971 = vmatpush.msra.mxu0 0.0
        %972 = vmatpush.msra.mxu0 0.0
        %973 = vmatpush.msra.mxu0 0.0
        %974 = vmatpush.msra.mxu0 0.0
        %975 = vmatpush.msra.mxu0 0.0
        %976 = vmatpush.msra.mxu0 0.0
        %977 = vmatpush.msra.mxu0 0.0
        %978 = vmatpush.msra.mxu0 0.0
        %979 = vmatpush.msra.mxu0 0.0
        %980 = vmatpush.msra.mxu0 0.0
        %981 = vmatpush.msra.mxu0 0.0
        %v982 = vand.u32 %v617, 4294901760
        %v983 = vsub.f32 %v617, %v982
        %v984 = vand.u32 %v983, 4294901760
        %v985 = vsub.f32 %v983, %v984
        %v986 = vand.u32 %v985, 4294901760
        %987 = vmatpush.msra.mxu0 %v986
        %v988 = vand.u32 %v613, 4294901760
        %v989 = vsub.f32 %v613, %v988
        %v990 = vand.u32 %v989, 4294901760
        %v991 = vsub.f32 %v989, %v990
        %v992 = vand.u32 %v991, 4294901760
        %993 = vmatpush.msra.mxu0 %v992
        %v994 = vand.u32 %v621, 4294901760
        %995 = vmatmul.f32.gmra.mxu0 %v994
        %v996 = vpop.f32.mrf.mxu0
        %v997 = vadd.f32 %v966, %v996
        %998 = vdwg.mxu0
        %999 = vmatpush.msra.mxu0 0.0
        %1000 = vmatpush.msra.mxu0 0.0
        %1001 = vmatpush.msra.mxu0 0.0
        %1002 = vmatpush.msra.mxu0 0.0
        %1003 = vmatpush.msra.mxu0 0.0
        %1004 = vmatpush.msra.mxu0 0.0
        %1005 = vmatpush.msra.mxu0 0.0
        %1006 = vmatpush.msra.mxu0 0.0
        %1007 = vmatpush.msra.mxu0 0.0
        %1008 = vmatpush.msra.mxu0 0.0
        %1009 = vmatpush.msra.mxu0 0.0
        %1010 = vmatpush.msra.mxu0 0.0
        %1011 = vmatpush.msra.mxu0 0.0
        %1012 = vmatpush.msra.mxu0 0.0
        %v1013 = vand.u32 %v617, 4294901760
        %v1014 = vsub.f32 %v617, %v1013
        %1015 = vmatpush.msra.mxu0 %v1014
        %v1016 = vand.u32 %v613, 4294901760
        %v1017 = vsub.f32 %v613, %v1016
        %1018 = vmatpush.msra.mxu0 %v1017
        %v1019 = vand.u32 %v621, 4294901760
        %v1020 = vsub.f32 %v621, %v1019
        %1021 = vmatmul.f32.gmra.mxu0 %v1020
        %v1022 = vpop.f32.mrf.mxu0
        %v1023 = vadd.f32 %v997, %v1022
        %1024 = vdwg.mxu0
        %1025 = vmatpush.msra.mxu0 0.0
        %1026 = vmatpush.msra.mxu0 0.0
        %1027 = vmatpush.msra.mxu0 0.0
        %1028 = vmatpush.msra.mxu0 0.0
        %1029 = vmatpush.msra.mxu0 0.0
        %1030 = vmatpush.msra.mxu0 0.0
        %1031 = vmatpush.msra.mxu0 0.0
        %1032 = vmatpush.msra.mxu0 0.0
        %1033 = vmatpush.msra.mxu0 0.0
        %1034 = vmatpush.msra.mxu0 0.0
        %1035 = vmatpush.msra.mxu0 0.0
        %1036 = vmatpush.msra.mxu0 0.0
        %1037 = vmatpush.msra.mxu0 0.0
        %1038 = vmatpush.msra.mxu0 0.0
        %v1039 = vand.u32 %v617, 4294901760
        %1040 = vmatpush.msra.mxu0 %v1039
        %v1041 = vand.u32 %v613, 4294901760
        %1042 = vmatpush.msra.mxu0 %v1041
        %v1043 = vand.u32 %v621, 4294901760
        %v1044 = vsub.f32 %v621, %v1043
        %v1045 = vand.u32 %v1044, 4294901760
        %1046 = vmatmul.f32.gmra.mxu0 %v1045
        %v1047 = vpop.f32.mrf.mxu0
        %v1048 = vadd.f32 %v1023, %v1047
        %1049 = vdwg.mxu0
        %1050 = vmatpush.msra.mxu0 0.0
        %1051 = vmatpush.msra.mxu0 0.0
        %1052 = vmatpush.msra.mxu0 0.0
        %1053 = vmatpush.msra.mxu0 0.0
        %1054 = vmatpush.msra.mxu0 0.0
        %1055 = vmatpush.msra.mxu0 0.0
        %1056 = vmatpush.msra.mxu0 0.0
        %1057 = vmatpush.msra.mxu0 0.0
        %1058 = vmatpush.msra.mxu0 0.0
        %1059 = vmatpush.msra.mxu0 0.0
        %1060 = vmatpush.msra.mxu0 0.0
        %1061 = vmatpush.msra.mxu0 0.0
        %1062 = vmatpush.msra.mxu0 0.0
        %1063 = vmatpush.msra.mxu0 0.0
        %v1064 = vand.u32 %v617, 4294901760
        %v1065 = vsub.f32 %v617, %v1064
        %v1066 = vand.u32 %v1065, 4294901760
        %1067 = vmatpush.msra.mxu0 %v1066
        %v1068 = vand.u32 %v613, 4294901760
        %v1069 = vsub.f32 %v613, %v1068
        %v1070 = vand.u32 %v1069, 4294901760
        %1071 = vmatpush.msra.mxu0 %v1070
        %v1072 = vand.u32 %v621, 4294901760
        %1073 = vmatmul.f32.gmra.mxu0 %v1072
        %v1074 = vpop.f32.mrf.mxu0
        %v1075 = vadd.f32 %v1048, %v1074
        %1076 = vdwg.mxu0
        %1077 = vmatpush.msra.mxu0 0.0
        %1078 = vmatpush.msra.mxu0 0.0
        %1079 = vmatpush.msra.mxu0 0.0
        %1080 = vmatpush.msra.mxu0 0.0
        %1081 = vmatpush.msra.mxu0 0.0
        %1082 = vmatpush.msra.mxu0 0.0
        %1083 = vmatpush.msra.mxu0 0.0
        %1084 = vmatpush.msra.mxu0 0.0
        %1085 = vmatpush.msra.mxu0 0.0
        %1086 = vmatpush.msra.mxu0 0.0
        %1087 = vmatpush.msra.mxu0 0.0
        %1088 = vmatpush.msra.mxu0 0.0
        %1089 = vmatpush.msra.mxu0 0.0
        %1090 = vmatpush.msra.mxu0 0.0
        %v1091 = vand.u32 %v617, 4294901760
        %1092 = vmatpush.msra.mxu0 %v1091
        %v1093 = vand.u32 %v613, 4294901760
        %1094 = vmatpush.msra.mxu0 %v1093
        %v1095 = vand.u32 %v621, 4294901760
        %1096 = vmatmul.f32.gmra.mxu0 %v1095
        %v1097 = vpop.f32.mrf.mxu0
        %v1098 = vadd.f32 %v1075, %v1097
        %1099 = vdwg.mxu0
        %1100 = vmatpush.msra.mxu0 0.0
        %1101 = vmatpush.msra.mxu0 0.0
        %1102 = vmatpush.msra.mxu0 0.0
        %1103 = vmatpush.msra.mxu0 0.0
        %1104 = vmatpush.msra.mxu0 0.0
        %1105 = vmatpush.msra.mxu0 0.0
        %1106 = vmatpush.msra.mxu0 0.0
        %1107 = vmatpush.msra.mxu0 0.0
        %1108 = vmatpush.msra.mxu0 0.0
        %1109 = vmatpush.msra.mxu0 0.0
        %1110 = vmatpush.msra.mxu0 0.0
        %1111 = vmatpush.msra.mxu0 0.0
        %1112 = vmatpush.msra.mxu0 0.0
        %1113 = vmatpush.msra.mxu0 0.0
        %v1114 = vand.u32 %v618, 4294901760
        %1115 = vmatpush.msra.mxu0 %v1114
        %v1116 = vand.u32 %v614, 4294901760
        %1117 = vmatpush.msra.mxu0 %v1116
        %v1118 = vand.u32 %v621, 4294901760
        %v1119 = vsub.f32 %v621, %v1118
        %v1120 = vand.u32 %v1119, 4294901760
        %v1121 = vsub.f32 %v1119, %v1120
        %v1122 = vand.u32 %v1121, 4294901760
        %1123 = vmatmul.f32.gmra.mxu0 %v1122
        %v1124 = vpop.f32.mrf.mxu0
        %v1125 = vadd.f32 0.0, %v1124
        %1126 = vdwg.mxu0
        %1127 = vmatpush.msra.mxu0 0.0
        %1128 = vmatpush.msra.mxu0 0.0
        %1129 = vmatpush.msra.mxu0 0.0
        %1130 = vmatpush.msra.mxu0 0.0
        %1131 = vmatpush.msra.mxu0 0.0
        %1132 = vmatpush.msra.mxu0 0.0
        %1133 = vmatpush.msra.mxu0 0.0
        %1134 = vmatpush.msra.mxu0 0.0
        %1135 = vmatpush.msra.mxu0 0.0
        %1136 = vmatpush.msra.mxu0 0.0
        %1137 = vmatpush.msra.mxu0 0.0
        %1138 = vmatpush.msra.mxu0 0.0
        %1139 = vmatpush.msra.mxu0 0.0
        %1140 = vmatpush.msra.mxu0 0.0
        %v1141 = vand.u32 %v618, 4294901760
        %v1142 = vsub.f32 %v618, %v1141
        %v1143 = vand.u32 %v1142, 4294901760
        %v1144 = vsub.f32 %v1142, %v1143
        %v1145 = vand.u32 %v1144, 4294901760
        %1146 = vmatpush.msra.mxu0 %v1145
        %v1147 = vand.u32 %v614, 4294901760
        %v1148 = vsub.f32 %v614, %v1147
        %v1149 = vand.u32 %v1148, 4294901760
        %v1150 = vsub.f32 %v1148, %v1149
        %v1151 = vand.u32 %v1150, 4294901760
        %1152 = vmatpush.msra.mxu0 %v1151
        %v1153 = vand.u32 %v621, 4294901760
        %1154 = vmatmul.f32.gmra.mxu0 %v1153
        %v1155 = vpop.f32.mrf.mxu0
        %v1156 = vadd.f32 %v1125, %v1155
        %1157 = vdwg.mxu0
        %1158 = vmatpush.msra.mxu0 0.0
        %1159 = vmatpush.msra.mxu0 0.0
        %1160 = vmatpush.msra.mxu0 0.0
        %1161 = vmatpush.msra.mxu0 0.0
        %1162 = vmatpush.msra.mxu0 0.0
        %1163 = vmatpush.msra.mxu0 0.0
        %1164 = vmatpush.msra.mxu0 0.0
        %1165 = vmatpush.msra.mxu0 0.0
        %1166 = vmatpush.msra.mxu0 0.0
        %1167 = vmatpush.msra.mxu0 0.0
        %1168 = vmatpush.msra.mxu0 0.0
        %1169 = vmatpush.msra.mxu0 0.0
        %1170 = vmatpush.msra.mxu0 0.0
        %1171 = vmatpush.msra.mxu0 0.0
        %v1172 = vand.u32 %v618, 4294901760
        %v1173 = vsub.f32 %v618, %v1172
        %1174 = vmatpush.msra.mxu0 %v1173
        %v1175 = vand.u32 %v614, 4294901760
        %v1176 = vsub.f32 %v614, %v1175
        %1177 = vmatpush.msra.mxu0 %v1176
        %v1178 = vand.u32 %v621, 4294901760
        %v1179 = vsub.f32 %v621, %v1178
        %1180 = vmatmul.f32.gmra.mxu0 %v1179
        %v1181 = vpop.f32.mrf.mxu0
        %v1182 = vadd.f32 %v1156, %v1181
        %1183 = vdwg.mxu0
        %1184 = vmatpush.msra.mxu0 0.0
        %1185 = vmatpush.msra.mxu0 0.0
        %1186 = vmatpush.msra.mxu0 0.0
        %1187 = vmatpush.msra.mxu0 0.0
        %1188 = vmatpush.msra.mxu0 0.0
        %1189 = vmatpush.msra.mxu0 0.0
        %1190 = vmatpush.msra.mxu0 0.0
        %1191 = vmatpush.msra.mxu0 0.0
        %1192 = vmatpush.msra.mxu0 0.0
        %1193 = vmatpush.msra.mxu0 0.0
        %1194 = vmatpush.msra.mxu0 0.0
        %1195 = vmatpush.msra.mxu0 0.0
        %1196 = vmatpush.msra.mxu0 0.0
        %1197 = vmatpush.msra.mxu0 0.0
        %v1198 = vand.u32 %v618, 4294901760
        %1199 = vmatpush.msra.mxu0 %v1198
        %v1200 = vand.u32 %v614, 4294901760
        %1201 = vmatpush.msra.mxu0 %v1200
        %v1202 = vand.u32 %v621, 4294901760
        %v1203 = vsub.f32 %v621, %v1202
        %v1204 = vand.u32 %v1203, 4294901760
        %1205 = vmatmul.f32.gmra.mxu0 %v1204
        %v1206 = vpop.f32.mrf.mxu0
        %v1207 = vadd.f32 %v1182, %v1206
        %1208 = vdwg.mxu0
        %1209 = vmatpush.msra.mxu0 0.0
        %1210 = vmatpush.msra.mxu0 0.0
        %1211 = vmatpush.msra.mxu0 0.0
        %1212 = vmatpush.msra.mxu0 0.0
        %1213 = vmatpush.msra.mxu0 0.0
        %1214 = vmatpush.msra.mxu0 0.0
        %1215 = vmatpush.msra.mxu0 0.0
        %1216 = vmatpush.msra.mxu0 0.0
        %1217 = vmatpush.msra.mxu0 0.0
        %1218 = vmatpush.msra.mxu0 0.0
        %1219 = vmatpush.msra.mxu0 0.0
        %1220 = vmatpush.msra.mxu0 0.0
        %1221 = vmatpush.msra.mxu0 0.0
        %1222 = vmatpush.msra.mxu0 0.0
        %v1223 = vand.u32 %v618, 4294901760
        %v1224 = vsub.f32 %v618, %v1223
        %v1225 = vand.u32 %v1224, 4294901760
        %1226 = vmatpush.msra.mxu0 %v1225
        %v1227 = vand.u32 %v614, 4294901760
        %v1228 = vsub.f32 %v614, %v1227
        %v1229 = vand.u32 %v1228, 4294901760
        %1230 = vmatpush.msra.mxu0 %v1229
        %v1231 = vand.u32 %v621, 4294901760
        %1232 = vmatmul.f32.gmra.mxu0 %v1231
        %v1233 = vpop.f32.mrf.mxu0
        %v1234 = vadd.f32 %v1207, %v1233
        %1235 = vdwg.mxu0
        %1236 = vmatpush.msra.mxu0 0.0
        %1237 = vmatpush.msra.mxu0 0.0
        %1238 = vmatpush.msra.mxu0 0.0
        %1239 = vmatpush.msra.mxu0 0.0
        %1240 = vmatpush.msra.mxu0 0.0
        %1241 = vmatpush.msra.mxu0 0.0
        %1242 = vmatpush.msra.mxu0 0.0
        %1243 = vmatpush.msra.mxu0 0.0
        %1244 = vmatpush.msra.mxu0 0.0
        %1245 = vmatpush.msra.mxu0 0.0
        %1246 = vmatpush.msra.mxu0 0.0
        %1247 = vmatpush.msra.mxu0 0.0
        %1248 = vmatpush.msra.mxu0 0.0
        %1249 = vmatpush.msra.mxu0 0.0
        %v1250 = vand.u32 %v618, 4294901760
        %1251 = vmatpush.msra.mxu0 %v1250
        %v1252 = vand.u32 %v614, 4294901760
        %1253 = vmatpush.msra.mxu0 %v1252
        %v1254 = vand.u32 %v621, 4294901760
        %1255 = vmatmul.f32.gmra.mxu0 %v1254
        %v1256 = vpop.f32.mrf.mxu0
        %v1257 = vadd.f32 %v1234, %v1256
        %1258 = vdwg.mxu0
        %v1259 = vsel %vm606, %v780, 0.0
        %v1260 = vsel %vm607, %v939, 0.0
        %v1261 = vsel %vm608, %v1098, 0.0
        %v1262 = vsel %vm609, %v1257, 0.0
        %1263 = vrot.lane.b32.xlu0 %v530, 2
        %v1264 = vpop.permute.xlu0 %1263
        %v1266 = vsub.f32 %v530, %v1264
        %v1267 = vadd.f32 %v1266, 1e-07
        %v1272 = vrot.slane %v526, 6
        %v1273 = vrot.slane %v527, 6
        %v1274 = vrot.slane %v528, 6
        %v1275 = vrot.slane %v529, 6
        %v1280 = vsub.f32 %v526, %v1272
        %v1281 = vsub.f32 %v527, %v1273
        %v1282 = vsub.f32 %v528, %v1274
        %v1283 = vsub.f32 %v529, %v1275
        %v1284 = vadd.f32 %v1280, 1e-07
        %v1285 = vadd.f32 %v1281, 1e-07
        %v1286 = vadd.f32 %v1282, 1e-07
        %v1287 = vadd.f32 %v1283, 1e-07
        %v1288 = vperm.slane %v526, 2
        %v1289 = vperm.slane %v527, 2
        %v1290 = vperm.slane %v528, 2
        %v1291 = vperm.slane %v529, 2
        %v1292 = vmin.f32 %v571, %v1288
        %v1293 = vmin.f32 %v571, %v1289
        %v1294 = vmin.f32 %v571, %v1290
        %v1295 = vmin.f32 %v571, %v1291
        %v1296 = vperm.slane %v526, 0
        %v1297 = vperm.slane %v527, 0
        %v1298 = vperm.slane %v528, 0
        %v1299 = vperm.slane %v529, 0
        %v1300 = vmax.f32 %v546, %v1296
        %v1301 = vmax.f32 %v546, %v1297
        %v1302 = vmax.f32 %v546, %v1298
        %v1303 = vmax.f32 %v546, %v1299
        %v1304 = vsub.f32 %v1292, %v1300
        %v1305 = vsub.f32 %v1293, %v1301
        %v1306 = vsub.f32 %v1294, %v1302
        %v1307 = vsub.f32 %v1295, %v1303
        %v1308 = vmax.f32 %v1304, 0.0
        %v1309 = vmax.f32 %v1305, 0.0
        %v1310 = vmax.f32 %v1306, 0.0
        %v1311 = vmax.f32 %v1307, 0.0
        %v1312 = vperm.slane %v526, 3
        %v1313 = vperm.slane %v527, 3
        %v1314 = vperm.slane %v528, 3
        %v1315 = vperm.slane %v529, 3
        %v1316 = vmin.f32 %v579, %v1312
        %v1317 = vmin.f32 %v579, %v1313
        %v1318 = vmin.f32 %v579, %v1314
        %v1319 = vmin.f32 %v579, %v1315
        %v1320 = vperm.slane %v526, 1
        %v1321 = vperm.slane %v527, 1
        %v1322 = vperm.slane %v528, 1
        %v1323 = vperm.slane %v529, 1
        %v1324 = vmax.f32 %v563, %v1320
        %v1325 = vmax.f32 %v563, %v1321
        %v1326 = vmax.f32 %v563, %v1322
        %v1327 = vmax.f32 %v563, %v1323
        %v1328 = vsub.f32 %v1316, %v1324
        %v1329 = vsub.f32 %v1317, %v1325
        %v1330 = vsub.f32 %v1318, %v1326
        %v1331 = vsub.f32 %v1319, %v1327
        %v1332 = vmax.f32 %v1328, 0.0
        %v1333 = vmax.f32 %v1329, 0.0
        %v1334 = vmax.f32 %v1330, 0.0
        %v1335 = vmax.f32 %v1331, 0.0
        %v1336 = vmul.f32 %v1308, %v1332
        %v1337 = vmul.f32 %v1309, %v1333
        %v1338 = vmul.f32 %v1310, %v1334
        %v1339 = vmul.f32 %v1311, %v1335
        %1341 = vrot.lane.b32.xlu0 %v1267, 127
        %v1342 = vpop.permute.xlu0 %1341
        %v1344 = vmul.f32 %v1266, %v1342
        %v1349 = vrot.slane %v1284, 1
        %v1350 = vrot.slane %v1285, 1
        %v1351 = vrot.slane %v1286, 1
        %v1352 = vrot.slane %v1287, 1
        %v1357 = vmul.f32 %v1280, %v1349
        %v1358 = vmul.f32 %v1281, %v1350
        %v1359 = vmul.f32 %v1282, %v1351
        %v1360 = vmul.f32 %v1283, %v1352
        %1362 = vset.pattern.permute.xlu0 2
        %1363 = vperm.xlu0 %1362, %v1344
        %v1364 = vpop.permute.xlu0 %1363
        %v1366 = vperm.slane %v1357, 2
        %v1367 = vperm.slane %v1358, 2
        %v1368 = vperm.slane %v1359, 2
        %v1369 = vperm.slane %v1360, 2
        %v1370 = vadd.f32 %v1364, %v1366
        %v1371 = vadd.f32 %v1364, %v1367
        %v1372 = vadd.f32 %v1364, %v1368
        %v1373 = vadd.f32 %v1364, %v1369
        %v1374 = vsub.f32 %v1370, %v1336
        %v1375 = vsub.f32 %v1371, %v1337
        %v1376 = vsub.f32 %v1372, %v1338
        %v1377 = vsub.f32 %v1373, %v1339
        %v1378 = vadd.f32 %v1374, 1e-07
        %v1379 = vadd.f32 %v1375, 1e-07
        %v1380 = vadd.f32 %v1376, 1e-07
        %v1381 = vadd.f32 %v1377, 1e-07
        %v1382 = vrcp.pop %v1378
        %v1383 = vmul.f32 %v1378, %v1382
        %v1384 = vsub.f32 1.0, %v1383
        %v1385 = vmul.f32 %v1382, %v1384
        %v1386 = vadd.f32 %v1382, %v1385
        %vm1387 = vweird.f32 %v1378
        %vm1388 = vweird.f32 %v1382
        %vm1389 = vmor %vm1387, %vm1388
        %v1390 = vsel %vm1389, %v1382, %v1386
        %v1391 = vand.u32 2147483647, %v1378
        %vm1392 = vcmp.eq.f32.partialorder %v1391, 8.507059e+37
        %v1393 = vand.u32 %v1378, 2147483648
        %v1394 = vor.u32 1.1754944e-38, %v1393
        %v1395 = vsel %vm1392, %v1394, %v1390
        %v1396 = vmul.f32 %v1336, %v1395
        %v1397 = vrcp.pop %v1379
        %v1398 = vmul.f32 %v1379, %v1397
        %v1399 = vsub.f32 1.0, %v1398
        %v1400 = vmul.f32 %v1397, %v1399
        %v1401 = vadd.f32 %v1397, %v1400
        %vm1402 = vweird.f32 %v1379
        %vm1403 = vweird.f32 %v1397
        %vm1404 = vmor %vm1402, %vm1403
        %v1405 = vsel %vm1404, %v1397, %v1401
        %v1406 = vand.u32 2147483647, %v1379
        %vm1407 = vcmp.eq.f32.partialorder %v1406, 8.507059e+37
        %v1408 = vand.u32 %v1379, 2147483648
        %v1409 = vor.u32 1.1754944e-38, %v1408
        %v1410 = vsel %vm1407, %v1409, %v1405
        %v1411 = vmul.f32 %v1337, %v1410
        %v1412 = vrcp.pop %v1380
        %v1413 = vmul.f32 %v1380, %v1412
        %v1414 = vsub.f32 1.0, %v1413
        %v1415 = vmul.f32 %v1412, %v1414
        %v1416 = vadd.f32 %v1412, %v1415
        %vm1417 = vweird.f32 %v1380
        %vm1418 = vweird.f32 %v1412
        %vm1419 = vmor %vm1417, %vm1418
        %v1420 = vsel %vm1419, %v1412, %v1416
        %v1421 = vand.u32 2147483647, %v1380
        %vm1422 = vcmp.eq.f32.partialorder %v1421, 8.507059e+37
        %v1423 = vand.u32 %v1380, 2147483648
        %v1424 = vor.u32 1.1754944e-38, %v1423
        %v1425 = vsel %vm1422, %v1424, %v1420
        %v1426 = vmul.f32 %v1338, %v1425
        %v1427 = vrcp.pop %v1381
        %v1428 = vmul.f32 %v1381, %v1427
        %v1429 = vsub.f32 1.0, %v1428
        %v1430 = vmul.f32 %v1427, %v1429
        %v1431 = vadd.f32 %v1427, %v1430
        %vm1432 = vweird.f32 %v1381
        %vm1433 = vweird.f32 %v1427
        %vm1434 = vmor %vm1432, %vm1433
        %v1435 = vsel %vm1434, %v1427, %v1431
        %v1436 = vand.u32 2147483647, %v1381
        %vm1437 = vcmp.eq.f32.partialorder %v1436, 8.507059e+37
        %v1438 = vand.u32 %v1381, 2147483648
        %v1439 = vor.u32 1.1754944e-38, %v1438
        %v1440 = vsel %vm1437, %v1439, %v1435
        %v1441 = vmul.f32 %v1339, %v1440
        %v1442 = vmax.f32 %v571, %v1288
        %v1443 = vmax.f32 %v571, %v1289
        %v1444 = vmax.f32 %v571, %v1290
        %v1445 = vmax.f32 %v571, %v1291
        %v1446 = vmin.f32 %v546, %v1296
        %v1447 = vmin.f32 %v546, %v1297
        %v1448 = vmin.f32 %v546, %v1298
        %v1449 = vmin.f32 %v546, %v1299
        %v1450 = vsub.f32 %v1442, %v1446
        %v1451 = vsub.f32 %v1443, %v1447
        %v1452 = vsub.f32 %v1444, %v1448
        %v1453 = vsub.f32 %v1445, %v1449
        %v1454 = vmax.f32 %v579, %v1312
        %v1455 = vmax.f32 %v579, %v1313
        %v1456 = vmax.f32 %v579, %v1314
        %v1457 = vmax.f32 %v579, %v1315
        %v1458 = vmin.f32 %v563, %v1320
        %v1459 = vmin.f32 %v563, %v1321
        %v1460 = vmin.f32 %v563, %v1322
        %v1461 = vmin.f32 %v563, %v1323
        %v1462 = vsub.f32 %v1454, %v1458
        %v1463 = vsub.f32 %v1455, %v1459
        %v1464 = vsub.f32 %v1456, %v1460
        %v1465 = vsub.f32 %v1457, %v1461
        %v1466 = vmul.f32 %v1450, %v1450
        %v1467 = vmul.f32 %v1451, %v1451
        %v1468 = vmul.f32 %v1452, %v1452
        %v1469 = vmul.f32 %v1453, %v1453
        %v1470 = vmul.f32 %v1462, %v1462
        %v1471 = vmul.f32 %v1463, %v1463
        %v1472 = vmul.f32 %v1464, %v1464
        %v1473 = vmul.f32 %v1465, %v1465
        %v1474 = vadd.f32 %v1466, %v1470
        %v1475 = vadd.f32 %v1467, %v1471
        %v1476 = vadd.f32 %v1468, %v1472
        %v1477 = vadd.f32 %v1469, %v1473
        %v1478 = vadd.f32 %v1474, 1e-07
        %v1479 = vadd.f32 %v1475, 1e-07
        %v1480 = vadd.f32 %v1476, 1e-07
        %v1481 = vadd.f32 %v1477, 1e-07
        %v1482 = vrot.slane %v526, 2
        %v1483 = vrot.slane %v527, 2
        %v1484 = vrot.slane %v528, 2
        %v1485 = vrot.slane %v529, 2
        %v1490 = vadd.f32 %v526, %v1482
        %v1491 = vadd.f32 %v527, %v1483
        %v1492 = vadd.f32 %v528, %v1484
        %v1493 = vadd.f32 %v529, %v1485
        %v1494 = vperm.slane %v1490, 0
        %v1495 = vperm.slane %v1491, 0
        %v1496 = vperm.slane %v1492, 0
        %v1497 = vperm.slane %v1493, 0
        %v1498 = vsub.f32 %v1494, %v546
        %v1499 = vsub.f32 %v1495, %v546
        %v1500 = vsub.f32 %v1496, %v546
        %v1501 = vsub.f32 %v1497, %v546
        %v1502 = vsub.f32 %v1498, %v571
        %v1503 = vsub.f32 %v1499, %v571
        %v1504 = vsub.f32 %v1500, %v571
        %v1505 = vsub.f32 %v1501, %v571
        %v1506 = vmul.f32 %v1502, %v1502
        %v1507 = vmul.f32 %v1503, %v1503
        %v1508 = vmul.f32 %v1504, %v1504
        %v1509 = vmul.f32 %v1505, %v1505
        %v1510 = vperm.slane %v1490, 1
        %v1511 = vperm.slane %v1491, 1
        %v1512 = vperm.slane %v1492, 1
        %v1513 = vperm.slane %v1493, 1
        %v1514 = vsub.f32 %v1510, %v563
        %v1515 = vsub.f32 %v1511, %v563
        %v1516 = vsub.f32 %v1512, %v563
        %v1517 = vsub.f32 %v1513, %v563
        %v1518 = vsub.f32 %v1514, %v579
        %v1519 = vsub.f32 %v1515, %v579
        %v1520 = vsub.f32 %v1516, %v579
        %v1521 = vsub.f32 %v1517, %v579
        %v1522 = vmul.f32 %v1518, %v1518
        %v1523 = vmul.f32 %v1519, %v1519
        %v1524 = vmul.f32 %v1520, %v1520
        %v1525 = vmul.f32 %v1521, %v1521
        %v1526 = vadd.f32 %v1506, %v1522
        %v1527 = vadd.f32 %v1507, %v1523
        %v1528 = vadd.f32 %v1508, %v1524
        %v1529 = vadd.f32 %v1509, %v1525
        %v1530 = vrcp.pop 4.0
        %v1531 = vmul.f32 4.0, %v1530
        %v1532 = vsub.f32 1.0, %v1531
        %v1533 = vmul.f32 %v1530, %v1532
        %v1534 = vadd.f32 %v1530, %v1533
        %vm1535 = vweird.f32 %v1530
        %v1536 = vsel %vm1535, %v1530, %v1534
        %v1537 = vmul.f32 %v1526, %v1536
        %v1538 = vmul.f32 %v1527, %v1536
        %v1539 = vmul.f32 %v1528, %v1536
        %v1540 = vmul.f32 %v1529, %v1536
        %v1541 = vperm.slane %v526, 4
        %v1542 = vperm.slane %v527, 4
        %v1543 = vperm.slane %v528, 4
        %v1544 = vperm.slane %v529, 4
        %1546 = vset.pattern.permute.xlu0 0
        %1547 = vperm.xlu0 %1546, %v531
        %v1548 = vpop.permute.xlu0 %1547
        %v1550 = vsub.f32 %v1541, %v1548
        %v1551 = vsub.f32 %v1542, %v1548
        %v1552 = vsub.f32 %v1543, %v1548
        %v1553 = vsub.f32 %v1544, %v1548
        %v1554 = vmul.f32 %v1550, %v1550
        %v1555 = vmul.f32 %v1551, %v1551
        %v1556 = vmul.f32 %v1552, %v1552
        %v1557 = vmul.f32 %v1553, %v1553
        %v1558 = vmul.f32 %v1554, 0.40528473
        %v1559 = vmul.f32 %v1555, 0.40528473
        %v1560 = vmul.f32 %v1556, 0.40528473
        %v1561 = vmul.f32 %v1557, 0.40528473
        %v1562 = vsub.f32 %v1558, %v1396
        %v1563 = vsub.f32 %v1559, %v1411
        %v1564 = vsub.f32 %v1560, %v1426
        %v1565 = vsub.f32 %v1561, %v1441
        %v1566 = vadd.f32 %v1562, 1.0000001
        %v1567 = vadd.f32 %v1563, 1.0000001
        %v1568 = vadd.f32 %v1564, 1.0000001
        %v1569 = vadd.f32 %v1565, 1.0000001
        %v1570 = vrcp.pop %v1566
        %v1571 = vmul.f32 %v1566, %v1570
        %v1572 = vsub.f32 1.0, %v1571
        %v1573 = vmul.f32 %v1570, %v1572
        %v1574 = vadd.f32 %v1570, %v1573
        %vm1575 = vweird.f32 %v1566
        %vm1576 = vweird.f32 %v1570
        %vm1577 = vmor %vm1575, %vm1576
        %v1578 = vsel %vm1577, %v1570, %v1574
        %v1579 = vand.u32 2147483647, %v1566
        %vm1580 = vcmp.eq.f32.partialorder %v1579, 8.507059e+37
        %v1581 = vand.u32 %v1566, 2147483648
        %v1582 = vor.u32 1.1754944e-38, %v1581
        %v1583 = vsel %vm1580, %v1582, %v1578
        %v1584 = vmul.f32 %v1558, %v1583
        %v1585 = vrcp.pop %v1567
        %v1586 = vmul.f32 %v1567, %v1585
        %v1587 = vsub.f32 1.0, %v1586
        %v1588 = vmul.f32 %v1585, %v1587
        %v1589 = vadd.f32 %v1585, %v1588
        %vm1590 = vweird.f32 %v1567
        %vm1591 = vweird.f32 %v1585
        %vm1592 = vmor %vm1590, %vm1591
        %v1593 = vsel %vm1592, %v1585, %v1589
        %v1594 = vand.u32 2147483647, %v1567
        %vm1595 = vcmp.eq.f32.partialorder %v1594, 8.507059e+37
        %v1596 = vand.u32 %v1567, 2147483648
        %v1597 = vor.u32 1.1754944e-38, %v1596
        %v1598 = vsel %vm1595, %v1597, %v1593
        %v1599 = vmul.f32 %v1559, %v1598
        %v1600 = vrcp.pop %v1568
        %v1601 = vmul.f32 %v1568, %v1600
        %v1602 = vsub.f32 1.0, %v1601
        %v1603 = vmul.f32 %v1600, %v1602
        %v1604 = vadd.f32 %v1600, %v1603
        %vm1605 = vweird.f32 %v1568
        %vm1606 = vweird.f32 %v1600
        %vm1607 = vmor %vm1605, %vm1606
        %v1608 = vsel %vm1607, %v1600, %v1604
        %v1609 = vand.u32 2147483647, %v1568
        %vm1610 = vcmp.eq.f32.partialorder %v1609, 8.507059e+37
        %v1611 = vand.u32 %v1568, 2147483648
        %v1612 = vor.u32 1.1754944e-38, %v1611
        %v1613 = vsel %vm1610, %v1612, %v1608
        %v1614 = vmul.f32 %v1560, %v1613
        %v1615 = vrcp.pop %v1569
        %v1616 = vmul.f32 %v1569, %v1615
        %v1617 = vsub.f32 1.0, %v1616
        %v1618 = vmul.f32 %v1615, %v1617
        %v1619 = vadd.f32 %v1615, %v1618
        %vm1620 = vweird.f32 %v1569
        %vm1621 = vweird.f32 %v1615
        %vm1622 = vmor %vm1620, %vm1621
        %v1623 = vsel %vm1622, %v1615, %v1619
        %v1624 = vand.u32 2147483647, %v1569
        %vm1625 = vcmp.eq.f32.partialorder %v1624, 8.507059e+37
        %v1626 = vand.u32 %v1569, 2147483648
        %v1627 = vor.u32 1.1754944e-38, %v1626
        %v1628 = vsel %vm1625, %v1627, %v1623
        %v1629 = vmul.f32 %v1561, %v1628
        %v1630 = vrcp.pop %v1478
        %v1631 = vmul.f32 %v1478, %v1630
        %v1632 = vsub.f32 1.0, %v1631
        %v1633 = vmul.f32 %v1630, %v1632
        %v1634 = vadd.f32 %v1630, %v1633
        %vm1635 = vweird.f32 %v1478
        %vm1636 = vweird.f32 %v1630
        %vm1637 = vmor %vm1635, %vm1636
        %v1638 = vsel %vm1637, %v1630, %v1634
        %v1639 = vand.u32 2147483647, %v1478
        %vm1640 = vcmp.eq.f32.partialorder %v1639, 8.507059e+37
        %v1641 = vand.u32 %v1478, 2147483648
        %v1642 = vor.u32 1.1754944e-38, %v1641
        %v1643 = vsel %vm1640, %v1642, %v1638
        %v1644 = vmul.f32 %v1537, %v1643
        %v1645 = vrcp.pop %v1479
        %v1646 = vmul.f32 %v1479, %v1645
        %v1647 = vsub.f32 1.0, %v1646
        %v1648 = vmul.f32 %v1645, %v1647
        %v1649 = vadd.f32 %v1645, %v1648
        %vm1650 = vweird.f32 %v1479
        %vm1651 = vweird.f32 %v1645
        %vm1652 = vmor %vm1650, %vm1651
        %v1653 = vsel %vm1652, %v1645, %v1649
        %v1654 = vand.u32 2147483647, %v1479
        %vm1655 = vcmp.eq.f32.partialorder %v1654, 8.507059e+37
        %v1656 = vand.u32 %v1479, 2147483648
        %v1657 = vor.u32 1.1754944e-38, %v1656
        %v1658 = vsel %vm1655, %v1657, %v1653
        %v1659 = vmul.f32 %v1538, %v1658
        %v1660 = vrcp.pop %v1480
        %v1661 = vmul.f32 %v1480, %v1660
        %v1662 = vsub.f32 1.0, %v1661
        %v1663 = vmul.f32 %v1660, %v1662
        %v1664 = vadd.f32 %v1660, %v1663
        %vm1665 = vweird.f32 %v1480
        %vm1666 = vweird.f32 %v1660
        %vm1667 = vmor %vm1665, %vm1666
        %v1668 = vsel %vm1667, %v1660, %v1664
        %v1669 = vand.u32 2147483647, %v1480
        %vm1670 = vcmp.eq.f32.partialorder %v1669, 8.507059e+37
        %v1671 = vand.u32 %v1480, 2147483648
        %v1672 = vor.u32 1.1754944e-38, %v1671
        %v1673 = vsel %vm1670, %v1672, %v1668
        %v1674 = vmul.f32 %v1539, %v1673
        %v1675 = vrcp.pop %v1481
        %v1676 = vmul.f32 %v1481, %v1675
        %v1677 = vsub.f32 1.0, %v1676
        %v1678 = vmul.f32 %v1675, %v1677
        %v1679 = vadd.f32 %v1675, %v1678
        %vm1680 = vweird.f32 %v1481
        %vm1681 = vweird.f32 %v1675
        %vm1682 = vmor %vm1680, %vm1681
        %v1683 = vsel %vm1682, %v1675, %v1679
        %v1684 = vand.u32 2147483647, %v1481
        %vm1685 = vcmp.eq.f32.partialorder %v1684, 8.507059e+37
        %v1686 = vand.u32 %v1481, 2147483648
        %v1687 = vor.u32 1.1754944e-38, %v1686
        %v1688 = vsel %vm1685, %v1687, %v1683
        %v1689 = vmul.f32 %v1540, %v1688
        %v1690 = vmul.f32 %v1558, %v1584
        %v1691 = vmul.f32 %v1559, %v1599
        %v1692 = vmul.f32 %v1560, %v1614
        %v1693 = vmul.f32 %v1561, %v1629
        %v1694 = vadd.f32 %v1644, %v1690
        %v1695 = vadd.f32 %v1659, %v1691
        %v1696 = vadd.f32 %v1674, %v1692
        %v1697 = vadd.f32 %v1689, %v1693
        %v1698 = vsub.f32 %v1396, %v1694
        %v1699 = vsub.f32 %v1411, %v1695
        %v1700 = vsub.f32 %v1426, %v1696
        %v1701 = vsub.f32 %v1441, %v1697
        %v1702 = vmax.f32 %v1698, 0.0
        %v1703 = vmax.f32 %v1699, 0.0
        %v1704 = vmax.f32 %v1700, 0.0
        %v1705 = vmax.f32 %v1701, 0.0
        %v1706 = vsel %vm606, %v1702, 0.0
        %v1707 = vsel %vm607, %v1703, 0.0
        %v1708 = vsel %vm608, %v1704, 0.0
        %v1709 = vsel %vm609, %v1705, 0.0
        %v1710 = vmul.f32 %v1706, %v1706
        %v1711 = vmul.f32 %v1707, %v1707
        %v1712 = vmul.f32 %v1708, %v1708
        %v1713 = vmul.f32 %v1709, %v1709
        %v1714 = vmul.f32 %v1710, %v1706
        %v1715 = vmul.f32 %v1711, %v1707
        %v1716 = vmul.f32 %v1712, %v1708
        %v1717 = vmul.f32 %v1713, %v1709
        %v1718 = vmul.f32 %v1714, %v1706
        %v1719 = vmul.f32 %v1715, %v1707
        %v1720 = vmul.f32 %v1716, %v1708
        %v1721 = vmul.f32 %v1717, %v1709
        %v1722 = vmul.f32 %v1718, %v1706
        %v1723 = vmul.f32 %v1719, %v1707
        %v1724 = vmul.f32 %v1720, %v1708
        %v1725 = vmul.f32 %v1721, %v1709
        %v1726 = vmul.f32 %v1722, %v1706
        %v1727 = vmul.f32 %v1723, %v1707
        %v1728 = vmul.f32 %v1724, %v1708
        %v1729 = vmul.f32 %v1725, %v1709
        %v1730 = vmul.f32 %v1259, %v1726
        %v1731 = vmul.f32 %v1260, %v1727
        %v1732 = vmul.f32 %v1261, %v1728
        %v1733 = vmul.f32 %v1262, %v1729
        %v1734 = vsel %vm606, 1, 0
        %v1735 = vsel %vm607, 1, 0
        %v1736 = vsel %vm608, 1, 0
        %v1737 = vsel %vm609, 1, 0
        %v1738 = vcvt.s32.f32 %v1734
        %v1739 = vcvt.s32.f32 %v1735
        %v1740 = vcvt.s32.f32 %v1736
        %v1741 = vcvt.s32.f32 %v1737
        %1742 = vst [vmem:[%s472] sm:$0xff] %v1738
        %1743 = vst [vmem:[%s472 + $0x8] sm:$0xff] %v1739
        %1744 = vst [vmem:[%s472 + $0x10] sm:$0xff] %v1740
        %1745 = vst [vmem:[%s472 + $0x18] sm:$0xff] %v1741
        %1746 = vst [vmem:[%s479] sm:$0xff] %v1706
        %1747 = vst [vmem:[%s479 + $0x8] sm:$0xff] %v1707
        %1748 = vst [vmem:[%s479 + $0x10] sm:$0xff] %v1708
        %1749 = vst [vmem:[%s479 + $0x18] sm:$0xff] %v1709
        %1750 = vst [vmem:[%s486] sm:$0xff] %v1730
        %1751 = vst [vmem:[%s486 + $0x8] sm:$0xff] %v1731
        %1752 = vst [vmem:[%s486 + $0x10] sm:$0xff] %v1732
        %1753 = vst [vmem:[%s486 + $0x18] sm:$0xff] %v1733
        %s1754 = sand.u32 %s238, 1
        %s1755 = scalar_lea.sflag [#allocation4], %s1754
        %s1756 = sand.u32 %s238, 1
        %s1757 = smul.addr %s1756, 32
        %s1758 = scalar_lea.vmem [#allocation5], %s1757
        %s1759 = sand.u32 %s30, 1
        %s1760 = scalar_lea.sflag [#allocation7], %s1759
        %s1761 = sand.u32 %s266, 1
        %s1762 = smul.addr %s1761, 32
        %s1763 = scalar_lea.vmem [#allocation6], %s1762
        %s1764 = sand.u32 %s30, 1
        %s1765 = scalar_lea.sflag [#allocation7], %s1764
        %s1766 = sand.u32 %s294, 1
        %s1767 = smul.addr %s1766, 32
        %s1768 = scalar_lea.vmem [#allocation8], %s1767
        // Predicated region
        $region53: #{tpu_custom_call.1} parent=47 // pred_check
          %p1769 = pneg %p248
        $region54: #{tpu_custom_call.1} parent=47 // pred_check_branch
          %1771 = sbr.rel (%p1769) target = $region56
        $region55: #{tpu_custom_call.1} parent=47 // pred_region
          %s1772 = smul.u32 4, %s35
          %1774 = vsyncadd %s1755, 0
          %s1775 = smul.addr %s34, 8
          %s1776 = sadd.s32 %s1772, %s1775
          %s1777 = smul.addr %s1776, 8
          %s1778 = scalar_lea.hbm %s7, %s1777
          %s1780 = sshll.u32 %s1758, 4
          %s1781 = int_to_ptr.vmem [resolvable:$true] %s1780
          %s1782 = sshll.u32 %s1778, 4
          %s1783 = int_to_ptr.hbm [resolvable:$true] %s1782
          %1785 = dma.vmem_to_hbm [thread:$0]  %s1781, 512, %s1783, %s1755
        $region56: #{tpu_custom_call.1} parent=47 // pred_fallthru
          _
        // Predicated region
        $region57: #{tpu_custom_call.1} parent=47 // pred_check
          %p1786 = pneg %p276
        $region58: #{tpu_custom_call.1} parent=47 // pred_check_branch
          %1788 = sbr.rel (%p1786) target = $region60
        $region59: #{tpu_custom_call.1} parent=47 // pred_region
          %s1789 = smul.u32 4, %s35
          %1791 = vsyncadd %s1760, 0
          %s1792 = smul.addr %s34, 8
          %s1793 = sadd.s32 %s1789, %s1792
          %s1794 = smul.addr %s1793, 8
          %s1795 = scalar_lea.hbm %s8, %s1794
          %s1797 = sshll.u32 %s1763, 4
          %s1798 = int_to_ptr.vmem [resolvable:$true] %s1797
          %s1799 = sshll.u32 %s1795, 4
          %s1800 = int_to_ptr.hbm [resolvable:$true] %s1799
          %1802 = dma.vmem_to_hbm [thread:$0]  %s1798, 512, %s1800, %s1760
        $region60: #{tpu_custom_call.1} parent=47 // pred_fallthru
          _
        // Predicated region
        $region61: #{tpu_custom_call.1} parent=47 // pred_check
          %p1803 = pneg %p304
        $region62: #{tpu_custom_call.1} parent=47 // pred_check_branch
          %1805 = sbr.rel (%p1803) target = $region64
        $region63: #{tpu_custom_call.1} parent=47 // pred_region
          %s1806 = smul.u32 4, %s35
          %1808 = vsyncadd %s1765, 0
          %s1809 = smul.addr %s34, 8
          %s1810 = sadd.s32 %s1806, %s1809
          %s1811 = smul.addr %s1810, 8
          %s1812 = scalar_lea.hbm %s9, %s1811
          %s1814 = sshll.u32 %s1768, 4
          %s1815 = int_to_ptr.vmem [resolvable:$true] %s1814
          %s1816 = sshll.u32 %s1812, 4
          %s1817 = int_to_ptr.hbm [resolvable:$true] %s1816
          %1819 = dma.vmem_to_hbm [thread:$0]  %s1815, 512, %s1817, %s1765
        $region64: #{tpu_custom_call.1} parent=47 // pred_fallthru
          _
      $region48: #{tpu_custom_call.1} parent=5 // pred_fallthru
        _
      %p1820 = scmp.le.s32.totalorder 2, %s25
      // Predicated region
      $region65: #{tpu_custom_call.1} parent=5 // pred_check
        %p1821 = pneg %p1820
      $region66: #{tpu_custom_call.1} parent=5 // pred_check_branch
        %1823 = sbr.rel (%p1821) target = $region68
      $region67: #{tpu_custom_call.1} parent=5 // pred_region
        %s1824 = ssub.s32 %s25, 2
        // Predicated region
        $region69: #{tpu_custom_call.1} parent=67 // pred_check
          %p1825 = pneg %p254
        $region70: #{tpu_custom_call.1} parent=67 // pred_check_branch
          %1827 = sbr.rel (%p1825) target = $region72
        $region71: #{tpu_custom_call.1} parent=67 // pred_region
          %s1828 = sand.u32 %s239, 1
          %s1829 = scalar_lea.sflag [#allocation4], %s1828
          %s1830 = sand.u32 %s239, 1
          %s1831 = smul.addr %s1830, 32
          %s1832 = scalar_lea.vmem [#allocation5], %s1831
          %1834 = dma.done %s1829, 512
        $region72: #{tpu_custom_call.1} parent=67 // pred_fallthru
          _
        // Predicated region
        $region73: #{tpu_custom_call.1} parent=67 // pred_check
          %p1835 = pneg %p282
        $region74: #{tpu_custom_call.1} parent=67 // pred_check_branch
          %1837 = sbr.rel (%p1835) target = $region76
        $region75: #{tpu_custom_call.1} parent=67 // pred_region
          %s1838 = sand.u32 %s31, 1
          %s1839 = scalar_lea.sflag [#allocation7], %s1838
          %s1840 = sand.u32 %s267, 1
          %s1841 = smul.addr %s1840, 32
          %s1842 = scalar_lea.vmem [#allocation6], %s1841
          %1844 = dma.done %s1839, 512
        $region76: #{tpu_custom_call.1} parent=67 // pred_fallthru
          _
        // Predicated region
        $region77: #{tpu_custom_call.1} parent=67 // pred_check
          %p1845 = pneg %p310
        $region78: #{tpu_custom_call.1} parent=67 // pred_check_branch
          %1847 = sbr.rel (%p1845) target = $region80
        $region79: #{tpu_custom_call.1} parent=67 // pred_region
          %s1848 = sand.u32 %s31, 1
          %s1849 = scalar_lea.sflag [#allocation7], %s1848
          %s1850 = sand.u32 %s295, 1
          %s1851 = smul.addr %s1850, 32
          %s1852 = scalar_lea.vmem [#allocation8], %s1851
          %1854 = dma.done %s1849, 512
        $region80: #{tpu_custom_call.1} parent=67 // pred_fallthru
          _
      $region68: #{tpu_custom_call.1} parent=5 // pred_fallthru
        _
    $region6: #{tpu_custom_call.1} parent=1 // loop_footer
      %s29 = sadd.s32 1, %s25
    $region7: #{tpu_custom_call.1} parent=1 // loop_footer_branch
      %24 = sbr.rel target = $region3
    $region8: #{tpu_custom_call.1} parent=1 // loop_exit
      _
    %1855 = vsyncpa [#allocation3], 1
    %s1856 = scalar_lea.sflag [#allocation3], 1
    %1857 = vsyncpa %s1856, 1
    %1858 = vsyncpa [#allocation4], 1
    %s1859 = scalar_lea.sflag [#allocation4], 1
    %1860 = vsyncpa %s1859, 1
    %1861 = vsyncpa [#allocation7], 1
    %s1862 = scalar_lea.sflag [#allocation7], 1
    %1863 = vsyncpa %s1862, 1

</llo_original>
